<compile_context>
chip_gen: v6e
topology: v6e:2x2x1
jax: 0.10.0
libtpu: 0.0.40
codegen_flags: <defaults>
</compile_context>

<pallas_src>
from functools import partial

import jax
import jax.numpy as jnp
from jax.experimental import pallas as pl
from jax.experimental.pallas import tpu as pltpu


def _round_up(x, m):
    return ((x + m - 1) // m) * m


def _default_tiles():
    """bf16 MXU tile sizes: larger on v6e/v7x, conservative on v5e/unknown."""
    try:
        kind = jax.devices()[0].device_kind.lower()
    except Exception:
        kind = ""
    if ("v6" in kind) or ("v7" in kind):
        return 512, 512, 1024          # ~6 MiB VMEM with double buffering
    return 256, 256, 512               # v5e (4x128x128 MXU) / default


# ----------------------------------------------------------------------------
# Kernel 1: bf16 GEMM, f32 accumulator, fused per-column BN statistics.
# grid = (J, I, K): j = output-column tile (outermost), i = row tile,
# k = reduction tile (innermost).  The stats block depends only on j, so it
# stays resident in VMEM for the whole (i, k) loop of that j (accumulator).
# ----------------------------------------------------------------------------
def _gemm_stats_kernel(a_ref, b_ref, y_ref, st_ref, acc_ref):
    i = pl.program_id(1)
    k = pl.program_id(2)

    @pl.when(jnp.logical_and(i == 0, k == 0))
    def _():
        st_ref[...] = jnp.zeros_like(st_ref)

    @pl.when(k == 0)
    def _():
        acc_ref[...] = jnp.zeros_like(acc_ref)

    acc_ref[...] += jnp.dot(a_ref[...], b_ref[...],
                            preferred_element_type=jnp.float32)

    @pl.when(k == pl.num_programs(2) - 1)
    def _():
        acc = acc_ref[...]
        y_ref[...] = acc.astype(y_ref.dtype)
        s = jnp.sum(acc, axis=0, keepdims=True)
        sq = jnp.sum(acc * acc, axis=0, keepdims=True)
        st_ref[...] += jnp.concatenate([s, sq], axis=0)


def pallas_gemm_with_stats(a, b):
    """a: [M, K], b: [K, N] -> (y [Mp, Np] bf16, stats [2, Np] f32).

    stats[0] = column sums, stats[1] = column sums-of-squares of the exact f32
    accumulator (padded rows are zero and do not contribute).
    """
    M, K = a.shape
    K2, N = b.shape
    assert K == K2
    TM, TN, TK = _default_tiles()
    tm = min(TM, _round_up(M, 16))     # 16: bf16 sublane packing
    tn = min(TN, _round_up(N, 128))
    tk = min(TK, _round_up(K, 128))
    Mp, Kp, Np = _round_up(M, tm), _round_up(K, tk), _round_up(N, tn)

    a = a.astype(jnp.bfloat16)
    b = b.astype(jnp.bfloat16)
    if (Mp, Kp) != (M, K):             # skip the pad when already aligned
        a = jnp.pad(a, ((0, Mp - M), (0, Kp - K)))
    if (Kp, Np) != (K, N):
        b = jnp.pad(b, ((0, Kp - K), (0, Np - N)))

    y, stats = pl.pallas_call(
        _gemm_stats_kernel,
        out_shape=(jax.ShapeDtypeStruct((Mp, Np), jnp.bfloat16),
                   jax.ShapeDtypeStruct((2, Np), jnp.float32)),
        grid_spec=pltpu.PrefetchScalarGridSpec(
            num_scalar_prefetch=0,
            grid=(Np // tn, Mp // tm, Kp // tk),
            in_specs=[pl.BlockSpec((tm, tk), lambda j, i, k: (i, k)),
                      pl.BlockSpec((tk, tn), lambda j, i, k: (k, j))],
            out_specs=[pl.BlockSpec((tm, tn), lambda j, i, k: (i, j)),
                       pl.BlockSpec((2, tn), lambda j, i, k: (0, j))],
            scratch_shapes=[pltpu.VMEM((tm, tn), jnp.float32)]),
        compiler_params=pltpu.CompilerParams(
            dimension_semantics=("parallel", "arbitrary", "arbitrary")),
    )(a, b)
    return y, stats


# ----------------------------------------------------------------------------
# Kernel 2: per-column scale/shift (BatchNorm affine) + activation.
# bf16 loads, f32 VPU arithmetic (v5e has no bf16 VPU), f32 stores.
# ----------------------------------------------------------------------------
def _make_scale_act_kernel(act):
    def kernel(y_ref, s_ref, b_ref, o_ref):
        y = y_ref[...].astype(jnp.float32)
        z = y * s_ref[...] + b_ref[...]
        if act == "relu":
            z = jnp.maximum(z, 0.0)
        elif act == "tanh":
            z = jnp.tanh(z)
        o_ref[...] = z.astype(o_ref.dtype)
    return kernel


def pallas_scale_act(y, scale_row, shift_row, act, out_dtype=jnp.float32):
    """y: [Mp, Cp] tile-aligned (bf16), scale/shift: [1, Cp] f32."""
    Mp, Cp = y.shape
    tm = min(256, Mp)
    while Mp % tm:                     # Mp is a multiple of 16, so this terminates
        tm -= 16
    return pl.pallas_call(
        _make_scale_act_kernel(act),
        out_shape=jax.ShapeDtypeStruct((Mp, Cp), out_dtype),
        grid_spec=pltpu.PrefetchScalarGridSpec(
            num_scalar_prefetch=0,
            grid=(Mp // tm,),
            in_specs=[pl.BlockSpec((tm, Cp), lambda i: (i, 0)),
                      pl.BlockSpec((1, Cp), lambda i: (0, 0)),
                      pl.BlockSpec((1, Cp), lambda i: (0, 0))],
            out_specs=pl.BlockSpec((tm, Cp), lambda i: (i, 0))),
        compiler_params=pltpu.CompilerParams(
            dimension_semantics=("parallel",)),
    )(y, scale_row, shift_row)


# ----------------------------------------------------------------------------
# Weight packing: ConvTranspose2d(4,2,1) as a sub-pixel GEMM operand.
# ----------------------------------------------------------------------------
def pack_deconv_weight(w):
    """w: [Cin, Cout, 4, 4] -> B: [9*Cin, 4*Cout] bf16 (packed once, offline).

    Rows = (tap, cin) with tap = dh*3+dw indexing the 3x3 im2col window of the
    zero-padded input; columns = (phase, cout) with phase = (oh%2)*2 + (ow%2).
    For output row 2*q + r, the kernel element used with input offset d-1 is
    k = r - 2*d + 3 (dropped if outside [0,4)) -- exactly ConvTranspose2d(4,2,1).
    """
    Cin, Cout = w.shape[0], w.shape[1]
    B = jnp.zeros((9, Cin, 4, Cout), jnp.float32)
    for dh in range(3):
        for dw in range(3):
            for rh in range(2):
                for rw in range(2):
                    kh = rh - 2 * dh + 3
                    kw = rw - 2 * dw + 3
                    if 0 <= kh < 4 and 0 <= kw < 4:
                        B = B.at[dh * 3 + dw, :, rh * 2 + rw, :].set(
                            w[:, :, kh, kw])
    return B.reshape(9 * Cin, 4 * Cout).astype(jnp.bfloat16)


# ----------------------------------------------------------------------------
# Conv_Decoder forward
# ----------------------------------------------------------------------------
@partial(jax.jit, static_argnames=("out_layer",))
def conv_decoder_forward(x_nchw, w_packed, gamma, beta, *, out_layer=False,
                         eps=1e-5):
    """x_nchw: [N, Cin, H, W] -> [N, Cout, 2H, 2W] (PyTorch NCHW semantics)."""
    N, Cin, H, W = x_nchw.shape
    assert w_packed.shape[0] == 9 * Cin
    Cout = w_packed.shape[1] // 4
    M, Nc = N * H * W, 4 * Cout

    # NCHW -> NHWC in bf16 storage; 3x3 im2col of the LOW-RES input (shared by
    # all four output phases -- no scatter over the 2H x 2W output).
    x = jnp.transpose(x_nchw, (0, 2, 3, 1)).astype(jnp.bfloat16)
    xp = jnp.pad(x, ((0, 0), (1, 1), (1, 1), (0, 0)))
    cols = [xp[:, dh:dh + H, dw:dw + W, :]
            for dh in range(3) for dw in range(3)]
    a = jnp.concatenate(cols, axis=-1).reshape(M, 9 * Cin)
    # TODO(synk): the im2col could be folded into the GEMM K axis (index_map or
    # manual DMA over the padded input) to avoid materializing it in HBM.

    # Single bf16 GEMM -> all 4 sub-pixel phases, with fused BN statistics.
    y, stats = pallas_gemm_with_stats(a, w_packed)      # y: [Mp, Ncp] bf16
    Ncp = y.shape[1]

    if out_layer:
        scale = jnp.ones((Cout,), jnp.float32)
        shift = jnp.zeros((Cout,), jnp.float32)
        act = "tanh"
    else:
        # BatchNorm2d training mode: batch statistics, biased variance.
        count = float(N * (2 * H) * (2 * W))
        col_sum = stats[0, :Nc].reshape(4, Cout).sum(axis=0)
        col_sq = stats[1, :Nc].reshape(4, Cout).sum(axis=0)
        mean = col_sum / count
        var = jnp.maximum(col_sq / count - mean * mean, 0.0)
        # TODO(synk): E[x^2]-E[x]^2 can cancel for large-mean activations; a
        # shifted two-pass reduction would be more robust numerically.
        scale = gamma.astype(jnp.float32) / jnp.sqrt(var + eps)
        shift = beta.astype(jnp.float32) - mean * scale
        act = "relu"

    scale_cols = jnp.pad(jnp.tile(scale, 4), (0, Ncp - Nc)).reshape(1, Ncp)
    shift_cols = jnp.pad(jnp.tile(shift, 4), (0, Ncp - Nc)).reshape(1, Ncp)
    z = pallas_scale_act(y, scale_cols, shift_cols, act)   # [Mp, Ncp] f32

    # Pixel-shuffle the 4 phase planes into the 2H x 2W output, return NCHW.
    z = z[:M, :Nc].reshape(N, H, W, 2, 2, Cout)
    out = jnp.transpose(z, (0, 5, 1, 3, 2, 4)).reshape(N, Cout, 2 * H, 2 * W)
    return out

# TODO(synk): Dropout(0.5) branch (use_dropout=True) is off in the default
# module config and is not implemented (training-time RNG).


# ----------------------------------------------------------------------------
# Pure-JAX reference (for correctness checking only)
# ----------------------------------------------------------------------------
def conv_decoder_ref(x, w, gamma, beta, *, out_layer=False, eps=1e-5):
    """ConvTranspose2d(4,2,1,bias=False) -> BN(train)+ReLU (or Tanh)."""
    wf = jnp.transpose(jnp.flip(w, axis=(2, 3)), (1, 0, 2, 3))   # [Cout,Cin,4,4]
    y = jax.lax.conv_general_dilated(
        x, wf, window_strides=(1, 1), padding=[(2, 2), (2, 2)],
        lhs_dilation=(2, 2), dimension_numbers=("NCHW", "OIHW", "NCHW"))
    if out_layer:
        return jnp.tanh(y)
    mean = jnp.mean(y, axis=(0, 2, 3), keepdims=True)
    var = jnp.mean(jnp.square(y - mean), axis=(0, 2, 3), keepdims=True)
    z = (y - mean) / jnp.sqrt(var + eps)
    z = z * gamma.reshape(1, -1, 1, 1) + beta.reshape(1, -1, 1, 1)
    return jnp.maximum(z, 0.0)


if __name__ == "__main__":
    key = jax.random.PRNGKey(0)
    kx, kw, kg = jax.random.split(key, 3)

    N, Cin, Cout, H, W = 2, 8, 4, 16, 16
    x = jax.random.normal(kx, (N, Cin, H, W), jnp.float32)
    # kaiming_normal_(a=0, mode='fan_in') on ConvTranspose2d weight [Cin,Cout,4,4]
    fan_in = Cout * 4 * 4
    w = ((2.0 / fan_in) ** 0.5) * jax.random.normal(
        kw, (Cin, Cout, 4, 4), jnp.float32)
    gamma = 1.0 + 0.02 * jax.random.normal(kg, (Cout,), jnp.float32)
    beta = jnp.zeros((Cout,), jnp.float32)

    w_packed = pack_deconv_weight(w)        # packed once, outside the forward

    # Default block: deconv -> BatchNorm(train) -> ReLU
    out = jax.block_until_ready(
        conv_decoder_forward(x, w_packed, gamma, beta, out_layer=False))
    assert out.shape == (N, Cout, 2 * H, 2 * W), out.shape
    ref = conv_decoder_ref(x, w, gamma, beta, out_layer=False)
    diff = jnp.abs(out - ref)
    assert bool(jnp.all(diff <= 4e-2 + 4e-2 * jnp.abs(ref))), float(jnp.max(diff))

    # out_layer variant: deconv -> Tanh
    out2 = jax.block_until_ready(
        conv_decoder_forward(x, w_packed, gamma, beta, out_layer=True))
    ref2 = conv_decoder_ref(x, w, gamma, beta, out_layer=True)
    diff2 = jnp.abs(out2 - ref2)
    assert bool(jnp.all(diff2 <= 4e-2 + 4e-2 * jnp.abs(ref2))), float(jnp.max(diff2))

    assert bool(jnp.all(jnp.isfinite(out))) and bool(jnp.all(jnp.isfinite(out2)))
    print("KERNEL_OK")
</pallas_src>

<mosaic_0001>
module attributes {stable_mosaic.version = 11 : i64} {
  func.func @_gemm_stats_kernel(%arg0: i32, %arg1: i32, %arg2: i32, %arg3: memref<256x128xbf16, #tpu.memory_space<vmem>>, %arg4: memref<128x128xbf16, #tpu.memory_space<vmem>>, %arg5: memref<256x128xbf16, #tpu.memory_space<vmem>>, %arg6: memref<2x128xf32, #tpu.memory_space<vmem>>, %arg7: memref<256x128xf32, #tpu.memory_space<vmem>>) attributes {dimension_semantics = [#tpu.dimension_semantics<parallel>, #tpu.dimension_semantics<arbitrary>, #tpu.dimension_semantics<arbitrary>], iteration_bounds = array<i64: 1, 2, 1>, scalar_prefetch = 0 : i64, scratch_operands = 1 : i64, tpu.core_type = #tpu.core_type<tc>, window_params = [{transform_indices = @transform_0, window_bounds = array<i64: 256, 128>}, {transform_indices = @transform_1, window_bounds = array<i64: 128, 128>}, {transform_indices = @transform_2, window_bounds = array<i64: 256, 128>}, {transform_indices = @transform_3, window_bounds = array<i64: 2, 128>}]} {
    %c0_i32 = arith.constant 0 : i32
    %0 = arith.cmpi eq, %arg1, %c0_i32 : i32
    %c0_i32_0 = arith.constant 0 : i32
    %1 = arith.cmpi eq, %arg2, %c0_i32_0 : i32
    %2 = arith.andi %0, %1 : i1
    %3 = arith.extui %2 : i1 to i32
    %c0_i32_1 = arith.constant 0 : i32
    %4 = arith.cmpi ne, %3, %c0_i32_1 : i32
    scf.if %4 {
      %cst_13 = arith.constant 0.000000e+00 : f32
      %17 = vector.broadcast %cst_13 : f32 to vector<2x128xf32>
      %c0_14 = arith.constant 0 : index
      %c0_15 = arith.constant 0 : index
      %18 = vector.load %arg6[%c0_14, %c0_15] : memref<2x128xf32, #tpu.memory_space<vmem>>, vector<2x128xf32>
      tpu.vector_store %arg6[%c0_14, %c0_15], %17 {strides = array<i32>} : memref<2x128xf32, #tpu.memory_space<vmem>>, vector<2x128xf32>,
    } else {
    }
    %c0_i32_2 = arith.constant 0 : i32
    %5 = arith.cmpi eq, %arg2, %c0_i32_2 : i32
    %6 = arith.extui %5 : i1 to i32
    %c0_i32_3 = arith.constant 0 : i32
    %7 = arith.cmpi ne, %6, %c0_i32_3 : i32
    scf.if %7 {
      %cst_13 = arith.constant 0.000000e+00 : f32
      %17 = vector.broadcast %cst_13 : f32 to vector<256x128xf32>
      %c0_14 = arith.constant 0 : index
      %c0_15 = arith.constant 0 : index
      %18 = vector.load %arg7[%c0_14, %c0_15] : memref<256x128xf32, #tpu.memory_space<vmem>>, vector<256x128xf32>
      tpu.vector_store %arg7[%c0_14, %c0_15], %17 {strides = array<i32>} : memref<256x128xf32, #tpu.memory_space<vmem>>, vector<256x128xf32>,
    } else {
    }
    %c0 = arith.constant 0 : index
    %c0_4 = arith.constant 0 : index
    %8 = vector.load %arg7[%c0, %c0_4] : memref<256x128xf32, #tpu.memory_space<vmem>>, vector<256x128xf32>
    %c0_5 = arith.constant 0 : index
    %c0_6 = arith.constant 0 : index
    %9 = vector.load %arg3[%c0_5, %c0_6] : memref<256x128xbf16, #tpu.memory_space<vmem>>, vector<256x128xbf16>
    %c0_7 = arith.constant 0 : index
    %c0_8 = arith.constant 0 : index
    %10 = vector.load %arg4[%c0_7, %c0_8] : memref<128x128xbf16, #tpu.memory_space<vmem>>, vector<128x128xbf16>
    %cst = arith.constant dense<0.000000e+00> : vector<256x128xf32>
    %11 = tpu.matmul %9, %10, %cst {dimension_numbers = #tpu.dot_dimension_numbers<[1], [0], [0], [1], [0, 0, 1, 1], [], []>} : vector<256x128xbf16>, vector<128x128xbf16>, vector<256x128xf32> -> vector<256x128xf32>
    %12 = arith.addf %8, %11 : vector<256x128xf32>
    %c0_9 = arith.constant 0 : index
    %c0_10 = arith.constant 0 : index
    %13 = vector.load %arg7[%c0_9, %c0_10] : memref<256x128xf32, #tpu.memory_space<vmem>>, vector<256x128xf32>
    tpu.vector_store %arg7[%c0_9, %c0_10], %12 {strides = array<i32>} : memref<256x128xf32, #tpu.memory_space<vmem>>, vector<256x128xf32>,
    %c0_i32_11 = arith.constant 0 : i32
    %14 = arith.cmpi eq, %arg2, %c0_i32_11 : i32
    %15 = arith.extui %14 : i1 to i32
    %c0_i32_12 = arith.constant 0 : i32
    %16 = arith.cmpi ne, %15, %c0_i32_12 : i32
    scf.if %16 {
      %c0_13 = arith.constant 0 : index
      %c0_14 = arith.constant 0 : index
      %17 = vector.load %arg7[%c0_13, %c0_14] : memref<256x128xf32, #tpu.memory_space<vmem>>, vector<256x128xf32>
      %18 = arith.truncf %17 : vector<256x128xf32> to vector<256x128xbf16>
      %c0_15 = arith.constant 0 : index
      %c0_16 = arith.constant 0 : index
      %19 = vector.load %arg5[%c0_15, %c0_16] : memref<256x128xbf16, #tpu.memory_space<vmem>>, vector<256x128xbf16>
      tpu.vector_store %arg5[%c0_15, %c0_16], %18 {strides = array<i32>} : memref<256x128xbf16, #tpu.memory_space<vmem>>, vector<256x128xbf16>,
      %cst_17 = arith.constant dense<0.000000e+00> : vector<128xf32>
      %20 = vector.multi_reduction <add>, %17, %cst_17 [0] : vector<256x128xf32> to vector<128xf32>
      %21 = vector.shape_cast %20 : vector<128xf32> to vector<1x128xf32>
      %22 = arith.mulf %17, %17 : vector<256x128xf32>
      %cst_18 = arith.constant dense<0.000000e+00> : vector<128xf32>
      %23 = vector.multi_reduction <add>, %22, %cst_18 [0] : vector<256x128xf32> to vector<128xf32>
      %24 = vector.shape_cast %23 : vector<128xf32> to vector<1x128xf32>
      %c0_19 = arith.constant 0 : index
      %c0_20 = arith.constant 0 : index
      %25 = vector.load %arg6[%c0_19, %c0_20] : memref<2x128xf32, #tpu.memory_space<vmem>>, vector<2x128xf32>
      %26 = tpu.concatenate %21, %24 in 0 : vector<1x128xf32>, vector<1x128xf32> -> vector<2x128xf32>
      %27 = arith.addf %25, %26 : vector<2x128xf32>
      %c0_21 = arith.constant 0 : index
      %c0_22 = arith.constant 0 : index
      %28 = vector.load %arg6[%c0_21, %c0_22] : memref<2x128xf32, #tpu.memory_space<vmem>>, vector<2x128xf32>
      tpu.vector_store %arg6[%c0_21, %c0_22], %27 {strides = array<i32>} : memref<2x128xf32, #tpu.memory_space<vmem>>, vector<2x128xf32>,
    } else {
    }
    return
  }
  func.func @transform_0(%arg0: i32, %arg1: i32, %arg2: i32) -> (i32, i32) {
    %c0_i32 = arith.constant 0 : i32
    return %arg1, %arg2 : i32, i32
  }
  func.func @transform_1(%arg0: i32, %arg1: i32, %arg2: i32) -> (i32, i32) {
    %c0_i32 = arith.constant 0 : i32
    return %arg2, %arg0 : i32, i32
  }
  func.func @transform_2(%arg0: i32, %arg1: i32, %arg2: i32) -> (i32, i32) {
    %c0_i32 = arith.constant 0 : i32
    return %arg1, %arg0 : i32, i32
  }
  func.func @transform_3(%arg0: i32, %arg1: i32, %arg2: i32) -> (i32, i32) {
    %c0_i32 = arith.constant 0 : i32
    %c0_i32_0 = arith.constant 0 : i32
    return %c0_i32, %arg0 : i32, i32
  }
}

module attributes {stable_mosaic.version = 11 : i64} {
  func.func @kernel(%arg0: i32, %arg1: memref<256x128xbf16, #tpu.memory_space<vmem>>, %arg2: memref<1x128xf32, #tpu.memory_space<vmem>>, %arg3: memref<1x128xf32, #tpu.memory_space<vmem>>, %arg4: memref<256x128xf32, #tpu.memory_space<vmem>>) attributes {dimension_semantics = [#tpu.dimension_semantics<parallel>], iteration_bounds = array<i64: 2>, scalar_prefetch = 0 : i64, scratch_operands = 0 : i64, tpu.core_type = #tpu.core_type<tc>, window_params = [{transform_indices = @transform_0, window_bounds = array<i64: 256, 128>}, {pipeline_mode = #tpu.pipeline_mode<synchronous>, transform_indices = @transform_1, window_bounds = array<i64: 1, 128>}, {pipeline_mode = #tpu.pipeline_mode<synchronous>, transform_indices = @transform_2, window_bounds = array<i64: 1, 128>}, {transform_indices = @transform_3, window_bounds = array<i64: 256, 128>}]} {
    %c0 = arith.constant 0 : index
    %c0_0 = arith.constant 0 : index
    %0 = vector.load %arg1[%c0, %c0_0] : memref<256x128xbf16, #tpu.memory_space<vmem>>, vector<256x128xbf16>
    %1 = arith.extf %0 : vector<256x128xbf16> to vector<256x128xf32>
    %c0_1 = arith.constant 0 : index
    %c0_2 = arith.constant 0 : index
    %2 = vector.load %arg2[%c0_1, %c0_2] : memref<1x128xf32, #tpu.memory_space<vmem>>, vector<1x128xf32>
    %3 = vector.broadcast %2 : vector<1x128xf32> to vector<256x128xf32>
    %4 = arith.mulf %1, %3 : vector<256x128xf32>
    %c0_3 = arith.constant 0 : index
    %c0_4 = arith.constant 0 : index
    %5 = vector.load %arg3[%c0_3, %c0_4] : memref<1x128xf32, #tpu.memory_space<vmem>>, vector<1x128xf32>
    %6 = vector.broadcast %5 : vector<1x128xf32> to vector<256x128xf32>
    %7 = arith.addf %4, %6 : vector<256x128xf32>
    %cst = arith.constant 0.000000e+00 : f32
    %8 = vector.broadcast %cst : f32 to vector<256x128xf32>
    %9 = arith.maximumf %7, %8 : vector<256x128xf32>
    %c0_5 = arith.constant 0 : index
    %c0_6 = arith.constant 0 : index
    %10 = vector.load %arg4[%c0_5, %c0_6] : memref<256x128xf32, #tpu.memory_space<vmem>>, vector<256x128xf32>
    tpu.vector_store %arg4[%c0_5, %c0_6], %9 {strides = array<i32>} : memref<256x128xf32, #tpu.memory_space<vmem>>, vector<256x128xf32>,
    return
  }
  func.func @transform_0(%arg0: i32) -> (i32, i32) {
    %c0_i32 = arith.constant 0 : i32
    %c0_i32_0 = arith.constant 0 : i32
    return %arg0, %c0_i32 : i32, i32
  }
  func.func @transform_1(%arg0: i32) -> (i32, i32) {
    %c0_i32 = arith.constant 0 : i32
    %c0_i32_0 = arith.constant 0 : i32
    %c0_i32_1 = arith.constant 0 : i32
    return %c0_i32, %c0_i32_0 : i32, i32
  }
  func.func @transform_2(%arg0: i32) -> (i32, i32) {
    %c0_i32 = arith.constant 0 : i32
    %c0_i32_0 = arith.constant 0 : i32
    %c0_i32_1 = arith.constant 0 : i32
    return %c0_i32, %c0_i32_0 : i32, i32
  }
  func.func @transform_3(%arg0: i32) -> (i32, i32) {
    %c0_i32 = arith.constant 0 : i32
    %c0_i32_0 = arith.constant 0 : i32
    return %arg0, %c0_i32 : i32, i32
  }
}

</mosaic_0001>

<llo_original>
// kernel: squeeze.2
$region0: #{squeeze.2}
  %s0 = inlined_call_operand.vmem [shape: f32[16], index: 0, kind: input, shape index: {}]
  %s1 = inlined_call_operand.vmem [shape: f32[4,4], index: 1, kind: output, shape index: {}]
  $region1: #{squeeze.2} parent=0
    #allocation0 [shape = 'u8[4096]{0}', space=vmem, size = 0x1000, scoped, tag = 'scoped mem for output reshape']
    #allocation1 [shape = 'u8[4096]{0}', space=vmem, size = 0x1000, scoped, tag = 'scoped mem for input reshape']
    %s3 = sshll.u32 1, 1
    %s4 = ssub.s32 %s3, 1
    %v5 = vld [vmem:[%s0] sm:%s4]
    %6 = vst [vmem:[#allocation1] sm:%s4] %v5
    %v7 = vld [vmem:[#allocation1] sm:$0x1]
    %vm8 = vcmask 31744
    %9 = vst.msk [vmem:[#allocation0] sm:$0x1] %vm8, %v7
    %v10 = vld [vmem:[#allocation1] sm:$0x1]
    %11 = vrot.lane.b32.xlu0 %v10, 124
    %v12 = vpop.permute.xlu0 %11
    %vm13 = vcmask 31744
    %s14 = scalar_lea.vmem [#allocation0], 1
    %15 = vst.msk [vmem:[%s14] sm:$0x1] %vm13, %v12
    %v16 = vld [vmem:[#allocation1] sm:$0x1]
    %17 = vrot.lane.b32.xlu0 %v16, 120
    %v18 = vpop.permute.xlu0 %17
    %vm19 = vcmask 31744
    %s20 = scalar_lea.vmem [#allocation0], 2
    %21 = vst.msk [vmem:[%s20] sm:$0x1] %vm19, %v18
    %v22 = vld [vmem:[#allocation1] sm:$0x1]
    %23 = vrot.lane.b32.xlu0 %v22, 116
    %v24 = vpop.permute.xlu0 %23
    %vm25 = vcmask 31744
    %s26 = scalar_lea.vmem [#allocation0], 3
    %27 = vst.msk [vmem:[%s26] sm:$0x1] %vm25, %v24
    %s29 = sshll.u32 1, 4
    %s30 = ssub.s32 %s29, 1
    %v32 = vld [vmem:[#allocation0] sm:%s30]
    %s33 = sshll.u32 1, 4
    %s34 = ssub.s32 %s33, 1
    %35 = vst [vmem:[%s1] sm:%s34] %v32

// kernel: tile.13
$region0: #{tile.13}
  #allocation0 [shape = 's32[1]{0}', space=sflag, size = 0x4, scoped, tag = 'scoped memory for tile.13']
  %s0 = inlined_call_operand.vmem [shape: f32[4], index: 0, kind: input, shape index: {}]
  %s1 = inlined_call_operand.vmem [shape: f32[4,4], index: 1, kind: output, shape index: {}]
  // Predicated region
  $region2: #{tile.13} parent=0 // pred_check
    _
  $region3: #{tile.13} parent=0 // pred_check_branch
    %3 = sbr.rel (0) target = $region5
  $region4: #{tile.13} parent=0 // pred_region
    _
  $region5: #{tile.13} parent=0 // pred_fallthru
    _
  %v4 = vld [vmem:[%s0] ss:$0 sm:$0xff]
  %5 = vst [vmem:[%s1] sm:$0xf] %v4

// kernel: tile.14
$region0: #{tile.14}
  %s0 = inlined_call_operand.vmem [shape: f32[4,4], index: 0, kind: input, shape index: {}]
  %s1 = inlined_call_operand.vmem [shape: f32[16], index: 1, kind: output, shape index: {}]
  $region1: #{tile.14} parent=0
    #allocation0 [shape = 'u8[4096]{0}', space=vmem, size = 0x1000, scoped, tag = 'scoped mem for output reshape']
    #allocation1 [shape = 'u8[4096]{0}', space=vmem, size = 0x1000, scoped, tag = 'scoped mem for input reshape']
    %s3 = sshll.u32 1, 4
    %s4 = ssub.s32 %s3, 1
    %v5 = vld [vmem:[%s0] sm:%s4]
    %6 = vst [vmem:[#allocation1] sm:%s4] %v5
    %v7 = vld [vmem:[#allocation1] sm:$0x1]
    %vm8 = vcmask 31744
    %9 = vst.msk [vmem:[#allocation0] sm:$0x1] %vm8, %v7
    %s10 = scalar_lea.vmem [#allocation1], 3
    %v11 = vld [vmem:[%s10] sm:$0x1]
    %12 = vrot.lane.b32.xlu0 %v11, 12
    %v13 = vpop.permute.xlu0 %12
    %vm14 = vcmask 130144
    %15 = vst.msk [vmem:[#allocation0] sm:$0x1] %vm14, %v13
    %s16 = scalar_lea.vmem [#allocation1], 2
    %v17 = vld [vmem:[%s16] sm:$0x1]
    %18 = vrot.lane.b32.xlu0 %v17, 8
    %v19 = vpop.permute.xlu0 %18
    %vm20 = vcmask 97344
    %21 = vst.msk [vmem:[#allocation0] sm:$0x1] %vm20, %v19
    %s22 = scalar_lea.vmem [#allocation1], 1
    %v23 = vld [vmem:[%s22] sm:$0x1]
    %24 = vrot.lane.b32.xlu0 %v23, 4
    %v25 = vpop.permute.xlu0 %24
    %vm26 = vcmask 64544
    %27 = vst.msk [vmem:[#allocation0] sm:$0x1] %vm26, %v25
    %s29 = sshll.u32 1, 1
    %s30 = ssub.s32 %s29, 1
    %v32 = vld [vmem:[#allocation0] sm:%s30]
    %s33 = sshll.u32 1, 1
    %s34 = ssub.s32 %s33, 1
    %35 = vst [vmem:[%s1] sm:%s34] %v32

// kernel: conv_decoder_forward.3
$region0: #{conv_decoder_forward.3}
  #allocation0 [shape = 'u32[]', space=smem, size = 0x4, offset = 0x4, fixed_abs, tag = 'smem constant byte address 0x4 - core index']
  #allocation1 [shape = 'u32[144,128]{1,0:T(1,128)}', space=vmem, size = 0x12000, scoped, tag = 'internal scratch']
  %s0 = inlined_call_operand.vmem [shape: bf16[512,128], index: 0, kind: input, shape index: {}]
  %s1 = inlined_call_operand.vmem [shape: f32[1,128], index: 1, kind: input, shape index: {}]
  %s2 = inlined_call_operand.vmem [shape: f32[1,128], index: 2, kind: input, shape index: {}]
  %s3 = inlined_call_operand.vmem [shape: f32[512,128], index: 3, kind: output, shape index: {}]
  %s4 = sld [smem:[#allocation0]]
  $region45: #{conv_decoder_forward.3} parent=0
    _
  %s6 = ssub.s32 1, %s4
  %s7 = scalar_select 0, %s6, %s4
  loop: start=0, step=1, limit=4
  $region2: #{conv_decoder_forward.3} parent=0 // loop_pre_header
    _
  $region3: #{conv_decoder_forward.3} parent=0 // loop_header
    %s9 = sphi 0, %s13
    %p10 = scmp.ge.s32.totalorder %s9, 4
    %s19 = sphi 0, %s21
    %s22 = sphi 0, %s19
    %s23 = sphi 0, %s22
    %s39 = sphi 0, %s23
    %s43 = sphi 0, %s43
    %s45 = sphi 0, %s43
    %s46 = sphi 0, %s45
    %s60 = sphi 0, %s46
    %s64 = sphi 0, %s64
    %s66 = sphi 0, %s64
    %s67 = sphi 0, %s66
    %s81 = sphi 0, %s67
    %s87 = sphi 0, %s89
    %s90 = sphi 0, %s87
    %s91 = sphi 0, %s90
    %s107 = sphi 0, %s91
  $region4: #{conv_decoder_forward.3} parent=0 // loop_header_branch
    %12 = sbr.rel (%p10) target = $region8
  $region5: #{conv_decoder_forward.3} parent=0 // loop_body
    %s14 = ssub.s32 %s9, 1
    %s15 = ssub.s32 %s9, 2
    %s16 = sadd.s32 %s9, 1
    %s17 = ssub.s32 %s9, %s16
    %p18 = scmp.eq.s32.totalorder %s17, 0
    %s20 = sadd.s32 %s19, 1
    %s21 = scalar_select %p18, %s19, %s20
    %p24 = pneg %p18
    %p25 = scmp.eq.s32.totalorder %s9, 1
    %p26 = por %p24, %p25
    %p27 = scmp.ne.s32.totalorder %s19, %s22
    %p28 = scmp.eq.s32.totalorder %s9, 0
    %p29 = por %p27, %p28
    %p30 = scmp.ne.s32.totalorder %s19, %s22
    %p31 = scmp.eq.s32.totalorder %s14, 1
    %p32 = por %p30, %p31
    %p33 = scmp.ne.s32.totalorder %s22, %s23
    %p34 = scmp.eq.s32.totalorder %s14, 0
    %p35 = por %p33, %p34
    %p36 = scmp.ne.s32.totalorder %s22, %s23
    %p37 = scmp.eq.s32.totalorder %s15, 1
    %p38 = por %p36, %p37
    %p40 = scmp.ne.s32.totalorder %s23, %s39
    %p41 = scmp.eq.s32.totalorder %s15, 0
    %p42 = por %p40, %p41
    %s44 = sadd.s32 %s43, 1
    %p47 = scmp.eq.s32.totalorder %s9, 1
    %p48 = scmp.ne.s32.totalorder %s43, %s45
    %p49 = scmp.eq.s32.totalorder %s9, 0
    %p50 = por %p48, %p49
    %p51 = scmp.ne.s32.totalorder %s43, %s45
    %p52 = scmp.eq.s32.totalorder %s14, 1
    %p53 = por %p51, %p52
    %p54 = scmp.ne.s32.totalorder %s45, %s46
    %p55 = scmp.eq.s32.totalorder %s14, 0
    %p56 = por %p54, %p55
    %p57 = scmp.ne.s32.totalorder %s45, %s46
    %p58 = scmp.eq.s32.totalorder %s15, 1
    %p59 = por %p57, %p58
    %p61 = scmp.ne.s32.totalorder %s46, %s60
    %p62 = scmp.eq.s32.totalorder %s15, 0
    %p63 = por %p61, %p62
    %s65 = sadd.s32 %s64, 1
    %p68 = scmp.eq.s32.totalorder %s9, 1
    %p69 = scmp.ne.s32.totalorder %s64, %s66
    %p70 = scmp.eq.s32.totalorder %s9, 0
    %p71 = por %p69, %p70
    %p72 = scmp.ne.s32.totalorder %s64, %s66
    %p73 = scmp.eq.s32.totalorder %s14, 1
    %p74 = por %p72, %p73
    %p75 = scmp.ne.s32.totalorder %s66, %s67
    %p76 = scmp.eq.s32.totalorder %s14, 0
    %p77 = por %p75, %p76
    %p78 = scmp.ne.s32.totalorder %s66, %s67
    %p79 = scmp.eq.s32.totalorder %s15, 1
    %p80 = por %p78, %p79
    %p82 = scmp.ne.s32.totalorder %s67, %s81
    %p83 = scmp.eq.s32.totalorder %s15, 0
    %p84 = por %p82, %p83
    %s85 = ssub.s32 %s9, %s16
    %p86 = scmp.eq.s32.totalorder %s85, 0
    %s88 = sadd.s32 %s87, 1
    %s89 = scalar_select %p86, %s87, %s88
    %p92 = pneg %p86
    %p93 = scmp.eq.s32.totalorder %s9, 1
    %p94 = por %p92, %p93
    %p95 = scmp.ne.s32.totalorder %s87, %s90
    %p96 = scmp.eq.s32.totalorder %s9, 0
    %p97 = por %p95, %p96
    %p98 = scmp.ne.s32.totalorder %s87, %s90
    %p99 = scmp.eq.s32.totalorder %s14, 1
    %p100 = por %p98, %p99
    %p101 = scmp.ne.s32.totalorder %s90, %s91
    %p102 = scmp.eq.s32.totalorder %s14, 0
    %p103 = por %p101, %p102
    %p104 = scmp.ne.s32.totalorder %s90, %s91
    %p105 = scmp.eq.s32.totalorder %s15, 1
    %p106 = por %p104, %p105
    %p108 = scmp.ne.s32.totalorder %s91, %s107
    %p109 = scmp.eq.s32.totalorder %s15, 0
    %p110 = por %p108, %p109
    %p111 = scmp.le.s32.totalorder 1, %s9
    %p112 = scmp.lt.s32.totalorder %s9, 3
    %p113 = pnand %p111, %p112
    %p114 = pneg %p113
    // Predicated region
    $region9: #{conv_decoder_forward.3} parent=5 // pred_check
      _
    $region10: #{conv_decoder_forward.3} parent=5 // pred_check_branch
      %116 = sbr.rel (%p113) target = $region12
    $region11: #{conv_decoder_forward.3} parent=5 // pred_region
      %s117 = ssub.s32 %s9, 1
      // Predicated region
      $region13: #{conv_decoder_forward.3} parent=11 // pred_check
        %p118 = pneg %p56
      $region14: #{conv_decoder_forward.3} parent=11 // pred_check_branch
        %120 = sbr.rel (%p118) target = $region16
      $region15: #{conv_decoder_forward.3} parent=11 // pred_region
        _
      $region16: #{conv_decoder_forward.3} parent=11 // pred_fallthru
        _
      // Predicated region
      $region17: #{conv_decoder_forward.3} parent=11 // pred_check
        %p121 = pneg %p77
      $region18: #{conv_decoder_forward.3} parent=11 // pred_check_branch
        %123 = sbr.rel (%p121) target = $region20
      $region19: #{conv_decoder_forward.3} parent=11 // pred_region
        _
      $region20: #{conv_decoder_forward.3} parent=11 // pred_fallthru
        _
    $region12: #{conv_decoder_forward.3} parent=5 // pred_fallthru
      _
    %p124 = scmp.lt.s32.totalorder %s9, 2
    // Predicated region
    $region21: #{conv_decoder_forward.3} parent=5 // pred_check
      %p125 = pneg %p124
    $region22: #{conv_decoder_forward.3} parent=5 // pred_check_branch
      %127 = sbr.rel (%p125) target = $region24
    $region23: #{conv_decoder_forward.3} parent=5 // pred_region
      // Predicated region
      $region25: #{conv_decoder_forward.3} parent=23 // pred_check
        %p128 = pneg %p29
      $region26: #{conv_decoder_forward.3} parent=23 // pred_check_branch
        %130 = sbr.rel (%p128) target = $region28
      $region27: #{conv_decoder_forward.3} parent=23 // pred_region
        %s131 = smul.u32 32, %s9
        %p132 = scmp.lt.s32.totalorder %s131, 63
        %s133 = scalar_select %p132, %s131, 63
        %s134 = smul.addr %s133, 4
        %s135 = scalar_lea.vmem %s0, %s134
        %s136 = smul.u32 32, %s9
      $region28: #{conv_decoder_forward.3} parent=23 // pred_fallthru
        _
    $region24: #{conv_decoder_forward.3} parent=5 // pred_fallthru
      _
    %p137 = scmp.le.s32.totalorder 1, %s9
    %p138 = scmp.lt.s32.totalorder %s9, 3
    %p139 = pnand %p137, %p138
    %p140 = pneg %p139
    // Predicated region
    $region29: #{conv_decoder_forward.3} parent=5 // pred_check
      _
    $region30: #{conv_decoder_forward.3} parent=5 // pred_check_branch
      %142 = sbr.rel (%p139) target = $region32
    $region31: #{conv_decoder_forward.3} parent=5 // pred_region
      %s143 = ssub.s32 %s9, 1
      %s144 = smul.u32 32, %s14
      %p145 = scmp.lt.s32.totalorder %s144, 63
      %s146 = scalar_select %p145, %s144, 63
      %s147 = smul.addr %s146, 4
      %s148 = scalar_lea.vmem %s0, %s147
      %p149 = pneg %p35
      %p150 = pneg %p32
      %p151 = pneg %p56
      %p152 = pneg %p53
      %p153 = pneg %p77
      %p154 = pneg %p74
      %p155 = pneg %p103
      %p156 = pneg %p100
      %s157 = smul.u32 32, %s14
      %p158 = scmp.lt.s32.totalorder %s157, 63
      %s159 = scalar_select %p158, %s157, 63
      %s160 = smul.addr %s159, 8
      %s161 = scalar_lea.vmem %s3, %s160
      %s162 = smul.u32 32, %s14
      %p163 = scmp.lt.s32.totalorder %s162, 63
      %s164 = scalar_select %p163, %s162, 63
      %s165 = smul.addr %s164, 4
      %s166 = scalar_lea.vmem %s0, %s165
      %s167 = smul.u32 32, %s14
      %s168 = smul.u32 32, %s14
      %p169 = scmp.lt.s32.totalorder %s168, 63
      %s170 = scalar_select %p169, %s168, 63
      %s171 = smul.addr %s170, 8
      %s172 = scalar_lea.vmem %s3, %s171
      %s173 = smul.u32 32, %s14
      %v174 = vld [vmem:[%s166] sm:$0xf]
      %v175 = vld [vmem:[%s166 + $0x4] sm:$0xf]
      %v176 = vld [vmem:[%s166 + $0x8] sm:$0xf]
      %v177 = vld [vmem:[%s166 + $0xc] sm:$0xf]
      %v178 = vld [vmem:[%s166 + $0x10] sm:$0xf]
      %v179 = vld [vmem:[%s166 + $0x14] sm:$0xf]
      %v180 = vld [vmem:[%s166 + $0x18] sm:$0xf]
      %v181 = vld [vmem:[%s166 + $0x1c] sm:$0xf]
      %v182 = vld [vmem:[%s166 + $0x20] sm:$0xf]
      %v183 = vld [vmem:[%s166 + $0x24] sm:$0xf]
      %v184 = vld [vmem:[%s166 + $0x28] sm:$0xf]
      %v185 = vld [vmem:[%s166 + $0x2c] sm:$0xf]
      %v186 = vld [vmem:[%s166 + $0x30] sm:$0xf]
      %v187 = vld [vmem:[%s166 + $0x34] sm:$0xf]
      %v188 = vld [vmem:[%s166 + $0x38] sm:$0xf]
      %v189 = vld [vmem:[%s166 + $0x3c] sm:$0xf]
      %v190 = vld [vmem:[%s166 + $0x40] sm:$0xf]
      %v191 = vld [vmem:[%s166 + $0x44] sm:$0xf]
      %v192 = vld [vmem:[%s166 + $0x48] sm:$0xf]
      %v193 = vld [vmem:[%s166 + $0x4c] sm:$0xf]
      %v194 = vld [vmem:[%s166 + $0x50] sm:$0xf]
      %v195 = vld [vmem:[%s166 + $0x54] sm:$0xf]
      %v196 = vld [vmem:[%s166 + $0x58] sm:$0xf]
      %v197 = vld [vmem:[%s166 + $0x5c] sm:$0xf]
      %v198 = vld [vmem:[%s166 + $0x60] sm:$0xf]
      %v199 = vld [vmem:[%s166 + $0x64] sm:$0xf]
      %v200 = vld [vmem:[%s166 + $0x68] sm:$0xf]
      %v201 = vld [vmem:[%s166 + $0x6c] sm:$0xf]
      %v202 = vld [vmem:[%s166 + $0x70] sm:$0xf]
      %v203 = vld [vmem:[%s166 + $0x74] sm:$0xf]
      %v204 = vld [vmem:[%s166 + $0x78] sm:$0xf]
      %v205 = vld [vmem:[%s166 + $0x7c] sm:$0xf]
      %v206 = vunpack.c.l.bf16 %v174
      %v207 = vunpack.c.l.bf16 %v175
      %v208 = vunpack.c.l.bf16 %v176
      %v209 = vunpack.c.l.bf16 %v177
      %v210 = vunpack.c.l.bf16 %v178
      %v211 = vunpack.c.l.bf16 %v179
      %v212 = vunpack.c.l.bf16 %v180
      %v213 = vunpack.c.l.bf16 %v181
      %v214 = vunpack.c.l.bf16 %v182
      %v215 = vunpack.c.l.bf16 %v183
      %v216 = vunpack.c.l.bf16 %v184
      %v217 = vunpack.c.l.bf16 %v185
      %v218 = vunpack.c.l.bf16 %v186
      %v219 = vunpack.c.l.bf16 %v187
      %v220 = vunpack.c.l.bf16 %v188
      %v221 = vunpack.c.l.bf16 %v189
      %v222 = vunpack.c.l.bf16 %v190
      %v223 = vunpack.c.l.bf16 %v191
      %v224 = vunpack.c.l.bf16 %v192
      %v225 = vunpack.c.l.bf16 %v193
      %v226 = vunpack.c.l.bf16 %v194
      %v227 = vunpack.c.l.bf16 %v195
      %v228 = vunpack.c.l.bf16 %v196
      %v229 = vunpack.c.l.bf16 %v197
      %v230 = vunpack.c.l.bf16 %v198
      %v231 = vunpack.c.l.bf16 %v199
      %v232 = vunpack.c.l.bf16 %v200
      %v233 = vunpack.c.l.bf16 %v201
      %v234 = vunpack.c.l.bf16 %v202
      %v235 = vunpack.c.l.bf16 %v203
      %v236 = vunpack.c.l.bf16 %v204
      %v237 = vunpack.c.l.bf16 %v205
      %v238 = vld [vmem:[%s1] sm:$0x1]
      %v240 = vlaneseq
      %v241 = vshrl.u32 %v240, 7
      %v242 = vsub.s32 0, %v241
      %v243 = vrot.slane %v238, %v242
      %v245 = vmul.f32 %v206, %v243
      %v246 = vmul.f32 %v207, %v243
      %v247 = vmul.f32 %v208, %v243
      %v248 = vmul.f32 %v209, %v243
      %v249 = vmul.f32 %v210, %v243
      %v250 = vmul.f32 %v211, %v243
      %v251 = vmul.f32 %v212, %v243
      %v252 = vmul.f32 %v213, %v243
      %v253 = vmul.f32 %v214, %v243
      %v254 = vmul.f32 %v215, %v243
      %v255 = vmul.f32 %v216, %v243
      %v256 = vmul.f32 %v217, %v243
      %v257 = vmul.f32 %v218, %v243
      %v258 = vmul.f32 %v219, %v243
      %v259 = vmul.f32 %v220, %v243
      %v260 = vmul.f32 %v221, %v243
      %v261 = vmul.f32 %v222, %v243
      %v262 = vmul.f32 %v223, %v243
      %v263 = vmul.f32 %v224, %v243
      %v264 = vmul.f32 %v225, %v243
      %v265 = vmul.f32 %v226, %v243
      %v266 = vmul.f32 %v227, %v243
      %v267 = vmul.f32 %v228, %v243
      %v268 = vmul.f32 %v229, %v243
      %v269 = vmul.f32 %v230, %v243
      %v270 = vmul.f32 %v231, %v243
      %v271 = vmul.f32 %v232, %v243
      %v272 = vmul.f32 %v233, %v243
      %v273 = vmul.f32 %v234, %v243
      %v274 = vmul.f32 %v235, %v243
      %v275 = vmul.f32 %v236, %v243
      %v276 = vmul.f32 %v237, %v243
      %v277 = vld [vmem:[%s2] sm:$0x1]
      %v279 = vlaneseq
      %v280 = vshrl.u32 %v279, 7
      %v281 = vsub.s32 0, %v280
      %v282 = vrot.slane %v277, %v281
      %v284 = vadd.f32 %v245, %v282
      %v285 = vadd.f32 %v246, %v282
      %v286 = vadd.f32 %v247, %v282
      %v287 = vadd.f32 %v248, %v282
      %v288 = vadd.f32 %v249, %v282
      %v289 = vadd.f32 %v250, %v282
      %v290 = vadd.f32 %v251, %v282
      %v291 = vadd.f32 %v252, %v282
      %v292 = vadd.f32 %v253, %v282
      %v293 = vadd.f32 %v254, %v282
      %v294 = vadd.f32 %v255, %v282
      %v295 = vadd.f32 %v256, %v282
      %v296 = vadd.f32 %v257, %v282
      %v297 = vadd.f32 %v258, %v282
      %v298 = vadd.f32 %v259, %v282
      %v299 = vadd.f32 %v260, %v282
      %v300 = vadd.f32 %v261, %v282
      %v301 = vadd.f32 %v262, %v282
      %v302 = vadd.f32 %v263, %v282
      %v303 = vadd.f32 %v264, %v282
      %v304 = vadd.f32 %v265, %v282
      %v305 = vadd.f32 %v266, %v282
      %v306 = vadd.f32 %v267, %v282
      %v307 = vadd.f32 %v268, %v282
      %v308 = vadd.f32 %v269, %v282
      %v309 = vadd.f32 %v270, %v282
      %v310 = vadd.f32 %v271, %v282
      %v311 = vadd.f32 %v272, %v282
      %v312 = vadd.f32 %v273, %v282
      %v313 = vadd.f32 %v274, %v282
      %v314 = vadd.f32 %v275, %v282
      %v315 = vadd.f32 %v276, %v282
      %v316 = vmax.f32 %v284, 0.0
      %v317 = vmax.f32 %v285, 0.0
      %v318 = vmax.f32 %v286, 0.0
      %v319 = vmax.f32 %v287, 0.0
      %v320 = vmax.f32 %v288, 0.0
      %v321 = vmax.f32 %v289, 0.0
      %v322 = vmax.f32 %v290, 0.0
      %v323 = vmax.f32 %v291, 0.0
      %v324 = vmax.f32 %v292, 0.0
      %v325 = vmax.f32 %v293, 0.0
      %v326 = vmax.f32 %v294, 0.0
      %v327 = vmax.f32 %v295, 0.0
      %v328 = vmax.f32 %v296, 0.0
      %v329 = vmax.f32 %v297, 0.0
      %v330 = vmax.f32 %v298, 0.0
      %v331 = vmax.f32 %v299, 0.0
      %v332 = vmax.f32 %v300, 0.0
      %v333 = vmax.f32 %v301, 0.0
      %v334 = vmax.f32 %v302, 0.0
      %v335 = vmax.f32 %v303, 0.0
      %v336 = vmax.f32 %v304, 0.0
      %v337 = vmax.f32 %v305, 0.0
      %v338 = vmax.f32 %v306, 0.0
      %v339 = vmax.f32 %v307, 0.0
      %v340 = vmax.f32 %v308, 0.0
      %v341 = vmax.f32 %v309, 0.0
      %v342 = vmax.f32 %v310, 0.0
      %v343 = vmax.f32 %v311, 0.0
      %v344 = vmax.f32 %v312, 0.0
      %v345 = vmax.f32 %v313, 0.0
      %v346 = vmax.f32 %v314, 0.0
      %v347 = vmax.f32 %v315, 0.0
      %348 = vst [vmem:[%s172] sm:$0xff] %v316
      %349 = vst [vmem:[%s172 + $0x8] sm:$0xff] %v317
      %350 = vst [vmem:[%s172 + $0x10] sm:$0xff] %v318
      %351 = vst [vmem:[%s172 + $0x18] sm:$0xff] %v319
      %352 = vst [vmem:[%s172 + $0x20] sm:$0xff] %v320
      %353 = vst [vmem:[%s172 + $0x28] sm:$0xff] %v321
      %354 = vst [vmem:[%s172 + $0x30] sm:$0xff] %v322
      %355 = vst [vmem:[%s172 + $0x38] sm:$0xff] %v323
      %356 = vst [vmem:[%s172 + $0x40] sm:$0xff] %v324
      %357 = vst [vmem:[%s172 + $0x48] sm:$0xff] %v325
      %358 = vst [vmem:[%s172 + $0x50] sm:$0xff] %v326
      %359 = vst [vmem:[%s172 + $0x58] sm:$0xff] %v327
      %360 = vst [vmem:[%s172 + $0x60] sm:$0xff] %v328
      %361 = vst [vmem:[%s172 + $0x68] sm:$0xff] %v329
      %362 = vst [vmem:[%s172 + $0x70] sm:$0xff] %v330
      %363 = vst [vmem:[%s172 + $0x78] sm:$0xff] %v331
      %364 = vst [vmem:[%s172 + $0x80] sm:$0xff] %v332
      %365 = vst [vmem:[%s172 + $0x88] sm:$0xff] %v333
      %366 = vst [vmem:[%s172 + $0x90] sm:$0xff] %v334
      %367 = vst [vmem:[%s172 + $0x98] sm:$0xff] %v335
      %368 = vst [vmem:[%s172 + $0xa0] sm:$0xff] %v336
      %369 = vst [vmem:[%s172 + $0xa8] sm:$0xff] %v337
      %370 = vst [vmem:[%s172 + $0xb0] sm:$0xff] %v338
      %371 = vst [vmem:[%s172 + $0xb8] sm:$0xff] %v339
      %372 = vst [vmem:[%s172 + $0xc0] sm:$0xff] %v340
      %373 = vst [vmem:[%s172 + $0xc8] sm:$0xff] %v341
      %374 = vst [vmem:[%s172 + $0xd0] sm:$0xff] %v342
      %375 = vst [vmem:[%s172 + $0xd8] sm:$0xff] %v343
      %376 = vst [vmem:[%s172 + $0xe0] sm:$0xff] %v344
      %377 = vst [vmem:[%s172 + $0xe8] sm:$0xff] %v345
      %378 = vst [vmem:[%s172 + $0xf0] sm:$0xff] %v346
      %379 = vst [vmem:[%s172 + $0xf8] sm:$0xff] %v347
      %s380 = smul.u32 32, %s14
      %p381 = scmp.lt.s32.totalorder %s380, 63
      %s382 = scalar_select %p381, %s380, 63
      %s383 = smul.addr %s382, 8
      %s384 = scalar_lea.vmem %s3, %s383
      // Predicated region
      $region33: #{conv_decoder_forward.3} parent=31 // pred_check
        %p385 = pneg %p100
      $region34: #{conv_decoder_forward.3} parent=31 // pred_check_branch
        %387 = sbr.rel (%p385) target = $region36
      $region35: #{conv_decoder_forward.3} parent=31 // pred_region
        %s388 = smul.u32 32, %s14
      $region36: #{conv_decoder_forward.3} parent=31 // pred_fallthru
        _
    $region32: #{conv_decoder_forward.3} parent=5 // pred_fallthru
      _
    %p389 = scmp.le.s32.totalorder 2, %s9
    // Predicated region
    $region37: #{conv_decoder_forward.3} parent=5 // pred_check
      %p390 = pneg %p389
    $region38: #{conv_decoder_forward.3} parent=5 // pred_check_branch
      %392 = sbr.rel (%p390) target = $region40
    $region39: #{conv_decoder_forward.3} parent=5 // pred_region
      %s393 = ssub.s32 %s9, 2
      // Predicated region
      $region41: #{conv_decoder_forward.3} parent=39 // pred_check
        %p394 = pneg %p106
      $region42: #{conv_decoder_forward.3} parent=39 // pred_check_branch
        %396 = sbr.rel (%p394) target = $region44
      $region43: #{conv_decoder_forward.3} parent=39 // pred_region
        %s397 = smul.u32 32, %s15
        %p398 = scmp.lt.s32.totalorder %s397, 63
        %s399 = scalar_select %p398, %s397, 63
        %s400 = smul.addr %s399, 8
        %s401 = scalar_lea.vmem %s3, %s400
      $region44: #{conv_decoder_forward.3} parent=39 // pred_fallthru
        _
    $region40: #{conv_decoder_forward.3} parent=5 // pred_fallthru
      _
  $region6: #{conv_decoder_forward.3} parent=0 // loop_footer
    %s13 = sadd.s32 1, %s9
  $region7: #{conv_decoder_forward.3} parent=0 // loop_footer_branch
    %8 = sbr.rel target = $region3
  $region8: #{conv_decoder_forward.3} parent=0 // loop_exit
    _

// kernel: conv_decoder_forward.2
$region0: #{conv_decoder_forward.2}
  #allocation0 [shape = 'u32[]', space=smem, size = 0x4, offset = 0x4, fixed_abs, tag = 'smem constant byte address 0x4 - core index']
  #allocation1 [shape = 'u32[144,128]{1,0:T(1,128)}', space=vmem, size = 0x12000, scoped, tag = 'internal scratch']
  #allocation2 [shape = 'f32[256,128]{1,0:T(8,128)}', space=vmem, size = 0x20000, scoped, tag = 'scratch operand']
  %s0 = inlined_call_operand.vmem [shape: bf16[512,128], index: 0, kind: input, shape index: {}]
  %s1 = inlined_call_operand.vmem [shape: bf16[128,128], index: 1, kind: input, shape index: {}]
  %s2 = inlined_call_operand.vmem [shape: bf16[512,128], index: 2, kind: output, shape index: {0}]
  %s3 = inlined_call_operand.vmem [shape: f32[2,128], index: 3, kind: output, shape index: {1}]
  %4 = xla_tuple %s2, %s3
  %s5 = sld [smem:[#allocation0]]
  $region61: #{conv_decoder_forward.2} parent=0
    _
  %s7 = ssub.s32 1, %s5
  %s8 = scalar_select 0, %s7, %s5
  loop: start=0, step=1, limit=4
  $region2: #{conv_decoder_forward.2} parent=0 // loop_pre_header
    _
  $region3: #{conv_decoder_forward.2} parent=0 // loop_header
    %s10 = sphi 0, %s14
    %p11 = scmp.ge.s32.totalorder %s10, 4
    %s17 = sphi 0, %s36
    %s18 = sphi 0, %s32
    %s19 = sphi 0, %s28
    %s20 = sphi 0, %s17
    %s21 = sphi 0, %s18
    %s22 = sphi 0, %s19
    %s23 = sphi 0, %s20
    %s24 = sphi 0, %s21
    %s25 = sphi 0, %s22
    %s41 = sphi 0, %s43
    %s44 = sphi 0, %s41
    %s45 = sphi 0, %s44
    %s61 = sphi 0, %s45
    %s69 = sphi 0, %s71
    %s72 = sphi 0, %s69
    %s73 = sphi 0, %s72
    %s89 = sphi 0, %s73
    %s97 = sphi 0, %s99
    %s100 = sphi 0, %s97
    %s101 = sphi 0, %s100
    %s117 = sphi 0, %s101
    %s123 = sphi 0, %s125
    %s126 = sphi 0, %s123
    %s127 = sphi 0, %s126
    %s143 = sphi 0, %s127
  $region4: #{conv_decoder_forward.2} parent=0 // loop_header_branch
    %13 = sbr.rel (%p11) target = $region8
  $region5: #{conv_decoder_forward.2} parent=0 // loop_body
    %s15 = ssub.s32 %s10, 1
    %s16 = ssub.s32 %s10, 2
    %s26 = sadd.s32 1, %s19
    %p27 = scmp.ge.s32.totalorder %s26, 1
    %s28 = scalar_select %p27, 0, %s26
    %s29 = sadd.s32 1, %s18
    %s30 = scalar_select %p27, %s29, %s18
    %p31 = scmp.ge.s32.totalorder %s30, 2
    %s32 = scalar_select %p31, 0, %s30
    %s33 = sadd.s32 1, %s17
    %s34 = scalar_select %p31, %s33, %s17
    %p35 = scmp.ge.s32.totalorder %s34, 1
    %s36 = scalar_select %p35, 0, %s34
    %s37 = ssub.s32 %s18, %s32
    %s38 = ssub.s32 %s19, %s28
    %s39 = sor.u32 %s37, %s38
    %p40 = scmp.eq.s32.totalorder %s39, 0
    %s42 = sadd.s32 %s41, 1
    %s43 = scalar_select %p40, %s41, %s42
    %p46 = pneg %p40
    %p47 = scmp.eq.s32.totalorder %s10, 1
    %p48 = por %p46, %p47
    %p49 = scmp.ne.s32.totalorder %s41, %s44
    %p50 = scmp.eq.s32.totalorder %s10, 0
    %p51 = por %p49, %p50
    %p52 = scmp.ne.s32.totalorder %s41, %s44
    %p53 = scmp.eq.s32.totalorder %s15, 1
    %p54 = por %p52, %p53
    %p55 = scmp.ne.s32.totalorder %s44, %s45
    %p56 = scmp.eq.s32.totalorder %s15, 0
    %p57 = por %p55, %p56
    %p58 = scmp.ne.s32.totalorder %s44, %s45
    %p59 = scmp.eq.s32.totalorder %s16, 1
    %p60 = por %p58, %p59
    %p62 = scmp.ne.s32.totalorder %s45, %s61
    %p63 = scmp.eq.s32.totalorder %s16, 0
    %p64 = por %p62, %p63
    %s65 = ssub.s32 %s19, %s28
    %s66 = ssub.s32 %s17, %s36
    %s67 = sor.u32 %s65, %s66
    %p68 = scmp.eq.s32.totalorder %s67, 0
    %s70 = sadd.s32 %s69, 1
    %s71 = scalar_select %p68, %s69, %s70
    %p74 = pneg %p68
    %p75 = scmp.eq.s32.totalorder %s10, 1
    %p76 = por %p74, %p75
    %p77 = scmp.ne.s32.totalorder %s69, %s72
    %p78 = scmp.eq.s32.totalorder %s10, 0
    %p79 = por %p77, %p78
    %p80 = scmp.ne.s32.totalorder %s69, %s72
    %p81 = scmp.eq.s32.totalorder %s15, 1
    %p82 = por %p80, %p81
    %p83 = scmp.ne.s32.totalorder %s72, %s73
    %p84 = scmp.eq.s32.totalorder %s15, 0
    %p85 = por %p83, %p84
    %p86 = scmp.ne.s32.totalorder %s72, %s73
    %p87 = scmp.eq.s32.totalorder %s16, 1
    %p88 = por %p86, %p87
    %p90 = scmp.ne.s32.totalorder %s73, %s89
    %p91 = scmp.eq.s32.totalorder %s16, 0
    %p92 = por %p90, %p91
    %s93 = ssub.s32 %s18, %s32
    %s94 = ssub.s32 %s17, %s36
    %s95 = sor.u32 %s93, %s94
    %p96 = scmp.eq.s32.totalorder %s95, 0
    %s98 = sadd.s32 %s97, 1
    %s99 = scalar_select %p96, %s97, %s98
    %p102 = pneg %p96
    %p103 = scmp.eq.s32.totalorder %s10, 1
    %p104 = por %p102, %p103
    %p105 = scmp.ne.s32.totalorder %s97, %s100
    %p106 = scmp.eq.s32.totalorder %s10, 0
    %p107 = por %p105, %p106
    %p108 = scmp.ne.s32.totalorder %s97, %s100
    %p109 = scmp.eq.s32.totalorder %s15, 1
    %p110 = por %p108, %p109
    %p111 = scmp.ne.s32.totalorder %s100, %s101
    %p112 = scmp.eq.s32.totalorder %s15, 0
    %p113 = por %p111, %p112
    %p114 = scmp.ne.s32.totalorder %s100, %s101
    %p115 = scmp.eq.s32.totalorder %s16, 1
    %p116 = por %p114, %p115
    %p118 = scmp.ne.s32.totalorder %s101, %s117
    %p119 = scmp.eq.s32.totalorder %s16, 0
    %p120 = por %p118, %p119
    %s121 = ssub.s32 %s17, %s36
    %p122 = scmp.eq.s32.totalorder %s121, 0
    %s124 = sadd.s32 %s123, 1
    %s125 = scalar_select %p122, %s123, %s124
    %p128 = pneg %p122
    %p129 = scmp.eq.s32.totalorder %s10, 1
    %p130 = por %p128, %p129
    %p131 = scmp.ne.s32.totalorder %s123, %s126
    %p132 = scmp.eq.s32.totalorder %s10, 0
    %p133 = por %p131, %p132
    %p134 = scmp.ne.s32.totalorder %s123, %s126
    %p135 = scmp.eq.s32.totalorder %s15, 1
    %p136 = por %p134, %p135
    %p137 = scmp.ne.s32.totalorder %s126, %s127
    %p138 = scmp.eq.s32.totalorder %s15, 0
    %p139 = por %p137, %p138
    %p140 = scmp.ne.s32.totalorder %s126, %s127
    %p141 = scmp.eq.s32.totalorder %s16, 1
    %p142 = por %p140, %p141
    %p144 = scmp.ne.s32.totalorder %s127, %s143
    %p145 = scmp.eq.s32.totalorder %s16, 0
    %p146 = por %p144, %p145
    %p147 = scmp.le.s32.totalorder 1, %s10
    %p148 = scmp.lt.s32.totalorder %s10, 3
    %p149 = pnand %p147, %p148
    %p150 = pneg %p149
    // Predicated region
    $region9: #{conv_decoder_forward.2} parent=5 // pred_check
      _
    $region10: #{conv_decoder_forward.2} parent=5 // pred_check_branch
      %152 = sbr.rel (%p149) target = $region12
    $region11: #{conv_decoder_forward.2} parent=5 // pred_region
      %s153 = ssub.s32 %s10, 1
      // Predicated region
      $region13: #{conv_decoder_forward.2} parent=11 // pred_check
        %p154 = pneg %p85
      $region14: #{conv_decoder_forward.2} parent=11 // pred_check_branch
        %156 = sbr.rel (%p154) target = $region16
      $region15: #{conv_decoder_forward.2} parent=11 // pred_region
        %s157 = smul.u32 16, %s22
        %p158 = scmp.lt.s32.totalorder %s157, 15
        %s159 = scalar_select %p158, %s157, 15
        %p160 = scmp.lt.s32.totalorder %s20, 0
        %s161 = scalar_select %p160, %s20, 0
        %s162 = sadd.s32 %s161, %s159
        %s163 = smul.addr %s162, 4
        %s164 = scalar_lea.vmem %s1, %s163
        %s165 = smul.u32 16, %s22
      $region16: #{conv_decoder_forward.2} parent=11 // pred_fallthru
        _
    $region12: #{conv_decoder_forward.2} parent=5 // pred_fallthru
      _
    %p166 = scmp.lt.s32.totalorder %s10, 2
    // Predicated region
    $region17: #{conv_decoder_forward.2} parent=5 // pred_check
      %p167 = pneg %p166
    $region18: #{conv_decoder_forward.2} parent=5 // pred_check_branch
      %169 = sbr.rel (%p167) target = $region20
    $region19: #{conv_decoder_forward.2} parent=5 // pred_region
      // Predicated region
      $region21: #{conv_decoder_forward.2} parent=19 // pred_check
        %p170 = pneg %p51
      $region22: #{conv_decoder_forward.2} parent=19 // pred_check_branch
        %172 = sbr.rel (%p170) target = $region24
      $region23: #{conv_decoder_forward.2} parent=19 // pred_region
        %s173 = smul.u32 32, %s18
        %p174 = scmp.lt.s32.totalorder %s173, 63
        %s175 = scalar_select %p174, %s173, 63
        %p176 = scmp.lt.s32.totalorder %s19, 0
        %s177 = scalar_select %p176, %s19, 0
        %s178 = sadd.s32 %s177, %s175
        %s179 = smul.addr %s178, 4
        %s180 = scalar_lea.vmem %s0, %s179
        %s181 = smul.u32 32, %s18
      $region24: #{conv_decoder_forward.2} parent=19 // pred_fallthru
        _
    $region20: #{conv_decoder_forward.2} parent=5 // pred_fallthru
      _
    %p182 = scmp.le.s32.totalorder 1, %s10
    %p183 = scmp.lt.s32.totalorder %s10, 3
    %p184 = pnand %p182, %p183
    %p185 = pneg %p184
    // Predicated region
    $region25: #{conv_decoder_forward.2} parent=5 // pred_check
      _
    $region26: #{conv_decoder_forward.2} parent=5 // pred_check_branch
      %187 = sbr.rel (%p184) target = $region28
    $region27: #{conv_decoder_forward.2} parent=5 // pred_region
      %s188 = ssub.s32 %s10, 1
      %s189 = smul.u32 32, %s21
      %p190 = scmp.lt.s32.totalorder %s189, 63
      %s191 = scalar_select %p190, %s189, 63
      %p192 = scmp.lt.s32.totalorder %s22, 0
      %s193 = scalar_select %p192, %s22, 0
      %s194 = sadd.s32 %s193, %s191
      %s195 = smul.addr %s194, 4
      %s196 = scalar_lea.vmem %s0, %s195
      %p197 = pneg %p57
      %p198 = pneg %p54
      %s199 = smul.u32 16, %s22
      %p200 = scmp.lt.s32.totalorder %s199, 15
      %s201 = scalar_select %p200, %s199, 15
      %p202 = scmp.lt.s32.totalorder %s20, 0
      %s203 = scalar_select %p202, %s20, 0
      %s204 = sadd.s32 %s203, %s201
      %s205 = smul.addr %s204, 4
      %s206 = scalar_lea.vmem %s1, %s205
      %p207 = pneg %p85
      %p208 = pneg %p82
      %p209 = pneg %p113
      %p210 = pneg %p110
      %s211 = smul.u32 32, %s21
      %p212 = scmp.lt.s32.totalorder %s211, 63
      %s213 = scalar_select %p212, %s211, 63
      %p214 = scmp.lt.s32.totalorder %s20, 0
      %s215 = scalar_select %p214, %s20, 0
      %s216 = sadd.s32 %s215, %s213
      %s217 = smul.addr %s216, 4
      %s218 = scalar_lea.vmem %s2, %s217
      %p219 = pneg %p139
      %p220 = pneg %p136
      %p221 = scmp.lt.s32.totalorder %s20, 0
      %s222 = scalar_select %p221, %s20, 0
      %s223 = smul.addr %s222, 2
      %s224 = scalar_lea.vmem %s3, %s223
      %s225 = smul.u32 32, %s21
      %p226 = scmp.lt.s32.totalorder %s225, 63
      %s227 = scalar_select %p226, %s225, 63
      %p228 = scmp.lt.s32.totalorder %s22, 0
      %s229 = scalar_select %p228, %s22, 0
      %s230 = sadd.s32 %s229, %s227
      %s231 = smul.addr %s230, 4
      %s232 = scalar_lea.vmem %s0, %s231
      %s233 = smul.u32 32, %s21
      %s234 = smul.u32 16, %s22
      %p235 = scmp.lt.s32.totalorder %s234, 15
      %s236 = scalar_select %p235, %s234, 15
      %p237 = scmp.lt.s32.totalorder %s20, 0
      %s238 = scalar_select %p237, %s20, 0
      %s239 = sadd.s32 %s238, %s236
      %s240 = smul.addr %s239, 4
      %s241 = scalar_lea.vmem %s1, %s240
      %s242 = smul.u32 16, %s22
      %s243 = smul.u32 32, %s21
      %p244 = scmp.lt.s32.totalorder %s243, 63
      %s245 = scalar_select %p244, %s243, 63
      %p246 = scmp.lt.s32.totalorder %s20, 0
      %s247 = scalar_select %p246, %s20, 0
      %s248 = sadd.s32 %s247, %s245
      %s249 = smul.addr %s248, 4
      %s250 = scalar_lea.vmem %s2, %s249
      %s251 = smul.u32 32, %s21
      %p252 = scmp.lt.s32.totalorder %s20, 0
      %s253 = scalar_select %p252, %s20, 0
      %s254 = smul.addr %s253, 2
      %s255 = scalar_lea.vmem %s3, %s254
      %p257 = scmp.eq.s32.totalorder %s21, 0
      %p258 = scmp.eq.s32.totalorder %s22, 0
      %p259 = pnand %p257, %p258
      %p260 = pneg %p259
      // Predicated region
      $region29: #{conv_decoder_forward.2} parent=27 // pred_check
        _
      $region30: #{conv_decoder_forward.2} parent=27 // pred_check_branch
        %262 = sbr.rel (%p259) target = $region32
      $region31: #{conv_decoder_forward.2} parent=27 // pred_region
        %263 = vst [vmem:[%s255] sm:$0x3] 0.0
      $region32: #{conv_decoder_forward.2} parent=27 // pred_fallthru
        _
      // Predicated region
      $region33: #{conv_decoder_forward.2} parent=27 // pred_check
        %p264 = pneg %p258
      $region34: #{conv_decoder_forward.2} parent=27 // pred_check_branch
        %266 = sbr.rel (%p264) target = $region36
      $region35: #{conv_decoder_forward.2} parent=27 // pred_region
        %267 = vst [vmem:[#allocation2] sm:$0xff] 0.0
        %268 = vst [vmem:[#allocation2 + $0x8] sm:$0xff] 0.0
        %269 = vst [vmem:[#allocation2 + $0x10] sm:$0xff] 0.0
        %270 = vst [vmem:[#allocation2 + $0x18] sm:$0xff] 0.0
        %271 = vst [vmem:[#allocation2 + $0x20] sm:$0xff] 0.0
        %272 = vst [vmem:[#allocation2 + $0x28] sm:$0xff] 0.0
        %273 = vst [vmem:[#allocation2 + $0x30] sm:$0xff] 0.0
        %274 = vst [vmem:[#allocation2 + $0x38] sm:$0xff] 0.0
        %275 = vst [vmem:[#allocation2 + $0x40] sm:$0xff] 0.0
        %276 = vst [vmem:[#allocation2 + $0x48] sm:$0xff] 0.0
        %277 = vst [vmem:[#allocation2 + $0x50] sm:$0xff] 0.0
        %278 = vst [vmem:[#allocation2 + $0x58] sm:$0xff] 0.0
        %279 = vst [vmem:[#allocation2 + $0x60] sm:$0xff] 0.0
        %280 = vst [vmem:[#allocation2 + $0x68] sm:$0xff] 0.0
        %281 = vst [vmem:[#allocation2 + $0x70] sm:$0xff] 0.0
        %282 = vst [vmem:[#allocation2 + $0x78] sm:$0xff] 0.0
        %283 = vst [vmem:[#allocation2 + $0x80] sm:$0xff] 0.0
        %284 = vst [vmem:[#allocation2 + $0x88] sm:$0xff] 0.0
        %285 = vst [vmem:[#allocation2 + $0x90] sm:$0xff] 0.0
        %286 = vst [vmem:[#allocation2 + $0x98] sm:$0xff] 0.0
        %287 = vst [vmem:[#allocation2 + $0xa0] sm:$0xff] 0.0
        %288 = vst [vmem:[#allocation2 + $0xa8] sm:$0xff] 0.0
        %289 = vst [vmem:[#allocation2 + $0xb0] sm:$0xff] 0.0
        %290 = vst [vmem:[#allocation2 + $0xb8] sm:$0xff] 0.0
        %291 = vst [vmem:[#allocation2 + $0xc0] sm:$0xff] 0.0
        %292 = vst [vmem:[#allocation2 + $0xc8] sm:$0xff] 0.0
        %293 = vst [vmem:[#allocation2 + $0xd0] sm:$0xff] 0.0
        %294 = vst [vmem:[#allocation2 + $0xd8] sm:$0xff] 0.0
        %295 = vst [vmem:[#allocation2 + $0xe0] sm:$0xff] 0.0
        %296 = vst [vmem:[#allocation2 + $0xe8] sm:$0xff] 0.0
        %297 = vst [vmem:[#allocation2 + $0xf0] sm:$0xff] 0.0
        %298 = vst [vmem:[#allocation2 + $0xf8] sm:$0xff] 0.0
      $region36: #{conv_decoder_forward.2} parent=27 // pred_fallthru
        _
      %v299 = vld [vmem:[#allocation2] sm:$0xff]
      %v300 = vld [vmem:[#allocation2 + $0x8] sm:$0xff]
      %v301 = vld [vmem:[#allocation2 + $0x10] sm:$0xff]
      %v302 = vld [vmem:[#allocation2 + $0x18] sm:$0xff]
      %v303 = vld [vmem:[#allocation2 + $0x20] sm:$0xff]
      %v304 = vld [vmem:[#allocation2 + $0x28] sm:$0xff]
      %v305 = vld [vmem:[#allocation2 + $0x30] sm:$0xff]
      %v306 = vld [vmem:[#allocation2 + $0x38] sm:$0xff]
      %v307 = vld [vmem:[#allocation2 + $0x40] sm:$0xff]
      %v308 = vld [vmem:[#allocation2 + $0x48] sm:$0xff]
      %v309 = vld [vmem:[#allocation2 + $0x50] sm:$0xff]
      %v310 = vld [vmem:[#allocation2 + $0x58] sm:$0xff]
      %v311 = vld [vmem:[#allocation2 + $0x60] sm:$0xff]
      %v312 = vld [vmem:[#allocation2 + $0x68] sm:$0xff]
      %v313 = vld [vmem:[#allocation2 + $0x70] sm:$0xff]
      %v314 = vld [vmem:[#allocation2 + $0x78] sm:$0xff]
      %v315 = vld [vmem:[#allocation2 + $0x80] sm:$0xff]
      %v316 = vld [vmem:[#allocation2 + $0x88] sm:$0xff]
      %v317 = vld [vmem:[#allocation2 + $0x90] sm:$0xff]
      %v318 = vld [vmem:[#allocation2 + $0x98] sm:$0xff]
      %v319 = vld [vmem:[#allocation2 + $0xa0] sm:$0xff]
      %v320 = vld [vmem:[#allocation2 + $0xa8] sm:$0xff]
      %v321 = vld [vmem:[#allocation2 + $0xb0] sm:$0xff]
      %v322 = vld [vmem:[#allocation2 + $0xb8] sm:$0xff]
      %v323 = vld [vmem:[#allocation2 + $0xc0] sm:$0xff]
      %v324 = vld [vmem:[#allocation2 + $0xc8] sm:$0xff]
      %v325 = vld [vmem:[#allocation2 + $0xd0] sm:$0xff]
      %v326 = vld [vmem:[#allocation2 + $0xd8] sm:$0xff]
      %v327 = vld [vmem:[#allocation2 + $0xe0] sm:$0xff]
      %v328 = vld [vmem:[#allocation2 + $0xe8] sm:$0xff]
      %v329 = vld [vmem:[#allocation2 + $0xf0] sm:$0xff]
      %v330 = vld [vmem:[#allocation2 + $0xf8] sm:$0xff]
      %v331 = vld [vmem:[%s232] sm:$0xf]
      %v332 = vld [vmem:[%s232 + $0x4] sm:$0xf]
      %v333 = vld [vmem:[%s232 + $0x8] sm:$0xf]
      %v334 = vld [vmem:[%s232 + $0xc] sm:$0xf]
      %v335 = vld [vmem:[%s232 + $0x10] sm:$0xf]
      %v336 = vld [vmem:[%s232 + $0x14] sm:$0xf]
      %v337 = vld [vmem:[%s232 + $0x18] sm:$0xf]
      %v338 = vld [vmem:[%s232 + $0x1c] sm:$0xf]
      %v339 = vld [vmem:[%s232 + $0x20] sm:$0xf]
      %v340 = vld [vmem:[%s232 + $0x24] sm:$0xf]
      %v341 = vld [vmem:[%s232 + $0x28] sm:$0xf]
      %v342 = vld [vmem:[%s232 + $0x2c] sm:$0xf]
      %v343 = vld [vmem:[%s232 + $0x30] sm:$0xf]
      %v344 = vld [vmem:[%s232 + $0x34] sm:$0xf]
      %v345 = vld [vmem:[%s232 + $0x38] sm:$0xf]
      %v346 = vld [vmem:[%s232 + $0x3c] sm:$0xf]
      %v347 = vld [vmem:[%s232 + $0x40] sm:$0xf]
      %v348 = vld [vmem:[%s232 + $0x44] sm:$0xf]
      %v349 = vld [vmem:[%s232 + $0x48] sm:$0xf]
      %v350 = vld [vmem:[%s232 + $0x4c] sm:$0xf]
      %v351 = vld [vmem:[%s232 + $0x50] sm:$0xf]
      %v352 = vld [vmem:[%s232 + $0x54] sm:$0xf]
      %v353 = vld [vmem:[%s232 + $0x58] sm:$0xf]
      %v354 = vld [vmem:[%s232 + $0x5c] sm:$0xf]
      %v355 = vld [vmem:[%s232 + $0x60] sm:$0xf]
      %v356 = vld [vmem:[%s232 + $0x64] sm:$0xf]
      %v357 = vld [vmem:[%s232 + $0x68] sm:$0xf]
      %v358 = vld [vmem:[%s232 + $0x6c] sm:$0xf]
      %v359 = vld [vmem:[%s232 + $0x70] sm:$0xf]
      %v360 = vld [vmem:[%s232 + $0x74] sm:$0xf]
      %v361 = vld [vmem:[%s232 + $0x78] sm:$0xf]
      %v362 = vld [vmem:[%s232 + $0x7c] sm:$0xf]
      %v363 = vld [vmem:[%s241] sm:$0xf]
      %v364 = vld [vmem:[%s241 + $0x4] sm:$0xf]
      %v365 = vld [vmem:[%s241 + $0x8] sm:$0xf]
      %v366 = vld [vmem:[%s241 + $0xc] sm:$0xf]
      %v367 = vld [vmem:[%s241 + $0x10] sm:$0xf]
      %v368 = vld [vmem:[%s241 + $0x14] sm:$0xf]
      %v369 = vld [vmem:[%s241 + $0x18] sm:$0xf]
      %v370 = vld [vmem:[%s241 + $0x1c] sm:$0xf]
      %v371 = vld [vmem:[%s241 + $0x20] sm:$0xf]
      %v372 = vld [vmem:[%s241 + $0x24] sm:$0xf]
      %v373 = vld [vmem:[%s241 + $0x28] sm:$0xf]
      %v374 = vld [vmem:[%s241 + $0x2c] sm:$0xf]
      %v375 = vld [vmem:[%s241 + $0x30] sm:$0xf]
      %v376 = vld [vmem:[%s241 + $0x34] sm:$0xf]
      %v377 = vld [vmem:[%s241 + $0x38] sm:$0xf]
      %v378 = vld [vmem:[%s241 + $0x3c] sm:$0xf]
      %v411 = vunpack.c.l.b16 %v331
      %v412 = vunpack.c.l.b16 %v332
      %v413 = vunpack.c.l.b16 %v333
      %v414 = vunpack.c.l.b16 %v334
      %v415 = vunpack.c.l.b16 %v335
      %v416 = vunpack.c.l.b16 %v336
      %v417 = vunpack.c.l.b16 %v337
      %v418 = vunpack.c.l.b16 %v338
      %v419 = vunpack.c.l.b16 %v339
      %v420 = vunpack.c.l.b16 %v340
      %v421 = vunpack.c.l.b16 %v341
      %v422 = vunpack.c.l.b16 %v342
      %v423 = vunpack.c.l.b16 %v343
      %v424 = vunpack.c.l.b16 %v344
      %v425 = vunpack.c.l.b16 %v345
      %v426 = vunpack.c.l.b16 %v346
      %v427 = vunpack.c.l.b16 %v347
      %v428 = vunpack.c.l.b16 %v348
      %v429 = vunpack.c.l.b16 %v349
      %v430 = vunpack.c.l.b16 %v350
      %v431 = vunpack.c.l.b16 %v351
      %v432 = vunpack.c.l.b16 %v352
      %v433 = vunpack.c.l.b16 %v353
      %v434 = vunpack.c.l.b16 %v354
      %v435 = vunpack.c.l.b16 %v355
      %v436 = vunpack.c.l.b16 %v356
      %v437 = vunpack.c.l.b16 %v357
      %v438 = vunpack.c.l.b16 %v358
      %v439 = vunpack.c.l.b16 %v359
      %v440 = vunpack.c.l.b16 %v360
      %v441 = vunpack.c.l.b16 %v361
      %v442 = vunpack.c.l.b16 %v362
      %v443 = vpack.c.b16 %v412, %v411
      %v444 = vpack.c.b16 %v414, %v413
      %v445 = vpack.c.b16 %v416, %v415
      %v446 = vpack.c.b16 %v418, %v417
      %v447 = vpack.c.b16 %v420, %v419
      %v448 = vpack.c.b16 %v422, %v421
      %v449 = vpack.c.b16 %v424, %v423
      %v450 = vpack.c.b16 %v426, %v425
      %v451 = vpack.c.b16 %v428, %v427
      %v452 = vpack.c.b16 %v430, %v429
      %v453 = vpack.c.b16 %v432, %v431
      %v454 = vpack.c.b16 %v434, %v433
      %v455 = vpack.c.b16 %v436, %v435
      %v456 = vpack.c.b16 %v438, %v437
      %v457 = vpack.c.b16 %v440, %v439
      %v458 = vpack.c.b16 %v442, %v441
      %v491 = vunpack.c.l.b16 %v363
      %v492 = vunpack.c.l.b16 %v364
      %v493 = vunpack.c.l.b16 %v365
      %v494 = vunpack.c.l.b16 %v366
      %v495 = vunpack.c.l.b16 %v367
      %v496 = vunpack.c.l.b16 %v368
      %v497 = vunpack.c.l.b16 %v369
      %v498 = vunpack.c.l.b16 %v370
      %v499 = vunpack.c.l.b16 %v371
      %v500 = vunpack.c.l.b16 %v372
      %v501 = vunpack.c.l.b16 %v373
      %v502 = vunpack.c.l.b16 %v374
      %v503 = vunpack.c.l.b16 %v375
      %v504 = vunpack.c.l.b16 %v376
      %v505 = vunpack.c.l.b16 %v377
      %v506 = vunpack.c.l.b16 %v378
      %v507 = vpack.c.b16 %v492, %v491
      %v508 = vpack.c.b16 %v494, %v493
      %v509 = vpack.c.b16 %v496, %v495
      %v510 = vpack.c.b16 %v498, %v497
      %v511 = vpack.c.b16 %v500, %v499
      %v512 = vpack.c.b16 %v502, %v501
      %v513 = vpack.c.b16 %v504, %v503
      %v514 = vpack.c.b16 %v506, %v505
      %523 = vmatprep.subr.bf16.mxu0 0
      %524 = vmatpush1.bf16.msra.mxu0 %v514
      %525 = vmatprep.subr.bf16.mxu0 0
      %526 = vmatpush1.bf16.msra.mxu0 %v513
      %527 = vmatprep.subr.bf16.mxu0 0
      %528 = vmatpush1.bf16.msra.mxu0 %v512
      %529 = vmatprep.subr.bf16.mxu0 0
      %530 = vmatpush1.bf16.msra.mxu0 %v511
      %531 = vmatprep.subr.bf16.mxu0 0
      %532 = vmatpush1.bf16.msra.mxu0 %v510
      %533 = vmatprep.subr.bf16.mxu0 0
      %534 = vmatpush1.bf16.msra.mxu0 %v509
      %535 = vmatprep.subr.bf16.mxu0 0
      %536 = vmatpush1.bf16.msra.mxu0 %v508
      %537 = vmatprep.subr.bf16.mxu0 0
      %538 = vmatpush1.bf16.msra.mxu0 %v507
      %539 = vmatprep.subr.bf16.mxu0 0
      %540 = vmatpush2.bf16.msra.mxu0 0
      %541 = vmatprep.subr.bf16.mxu0 0
      %542 = vmatpush2.bf16.msra.mxu0 0
      %543 = vmatprep.subr.bf16.mxu0 0
      %544 = vmatpush2.bf16.msra.mxu0 0
      %545 = vmatprep.subr.bf16.mxu0 0
      %546 = vmatpush2.bf16.msra.mxu0 0
      %547 = vmatprep.subr.bf16.mxu0 0
      %548 = vmatpush2.bf16.msra.mxu0 0
      %549 = vmatprep.subr.bf16.mxu0 0
      %550 = vmatpush2.bf16.msra.mxu0 0
      %551 = vmatprep.subr.bf16.mxu0 0
      %552 = vmatpush2.bf16.msra.mxu0 0
      %553 = vmatprep.subr.bf16.mxu0 0
      %554 = vmatpush2.bf16.msra.mxu0 0
      %555 = vmatprep.mubr.bf16.mxu0 0
      %556 = vmatmul.mubr.bf16.gmra.mxu0 %v443
      %v557 = vpop.f32.mrf.mxu0
      %v558 = vadd.f32 0.0, %v557
      %v559 = vpop.f32.mrf.mxu0
      %v560 = vpop.f32.mrf.mxu0
      %v561 = vadd.f32 0.0, %v560
      %v562 = vpop.f32.mrf.mxu0
      %563 = vmatprep.mubr.bf16.mxu0 0
      %564 = vmatmul.mubr.bf16.gmra.mxu0 %v444
      %v565 = vpop.f32.mrf.mxu0
      %v566 = vadd.f32 0.0, %v565
      %v567 = vpop.f32.mrf.mxu0
      %v568 = vpop.f32.mrf.mxu0
      %v569 = vadd.f32 0.0, %v568
      %v570 = vpop.f32.mrf.mxu0
      %571 = vmatprep.mubr.bf16.mxu0 0
      %572 = vmatmul.mubr.bf16.gmra.mxu0 %v445
      %v573 = vpop.f32.mrf.mxu0
      %v574 = vadd.f32 0.0, %v573
      %v575 = vpop.f32.mrf.mxu0
      %v576 = vpop.f32.mrf.mxu0
      %v577 = vadd.f32 0.0, %v576
      %v578 = vpop.f32.mrf.mxu0
      %579 = vmatprep.mubr.bf16.mxu0 0
      %580 = vmatmul.mubr.bf16.gmra.mxu0 %v446
      %v581 = vpop.f32.mrf.mxu0
      %v582 = vadd.f32 0.0, %v581
      %v583 = vpop.f32.mrf.mxu0
      %v584 = vpop.f32.mrf.mxu0
      %v585 = vadd.f32 0.0, %v584
      %v586 = vpop.f32.mrf.mxu0
      %587 = vmatprep.mubr.bf16.mxu0 0
      %588 = vmatmul.mubr.bf16.gmra.mxu0 %v447
      %v589 = vpop.f32.mrf.mxu0
      %v590 = vadd.f32 0.0, %v589
      %v591 = vpop.f32.mrf.mxu0
      %v592 = vpop.f32.mrf.mxu0
      %v593 = vadd.f32 0.0, %v592
      %v594 = vpop.f32.mrf.mxu0
      %595 = vmatprep.mubr.bf16.mxu0 0
      %596 = vmatmul.mubr.bf16.gmra.mxu0 %v448
      %v597 = vpop.f32.mrf.mxu0
      %v598 = vadd.f32 0.0, %v597
      %v599 = vpop.f32.mrf.mxu0
      %v600 = vpop.f32.mrf.mxu0
      %v601 = vadd.f32 0.0, %v600
      %v602 = vpop.f32.mrf.mxu0
      %603 = vmatprep.mubr.bf16.mxu0 0
      %604 = vmatmul.mubr.bf16.gmra.mxu0 %v449
      %v605 = vpop.f32.mrf.mxu0
      %v606 = vadd.f32 0.0, %v605
      %v607 = vpop.f32.mrf.mxu0
      %v608 = vpop.f32.mrf.mxu0
      %v609 = vadd.f32 0.0, %v608
      %v610 = vpop.f32.mrf.mxu0
      %611 = vmatprep.mubr.bf16.mxu0 0
      %612 = vmatmul.mubr.bf16.gmra.mxu0 %v450
      %v613 = vpop.f32.mrf.mxu0
      %v614 = vadd.f32 0.0, %v613
      %v615 = vpop.f32.mrf.mxu0
      %v616 = vpop.f32.mrf.mxu0
      %v617 = vadd.f32 0.0, %v616
      %v618 = vpop.f32.mrf.mxu0
      %619 = vmatprep.mubr.bf16.mxu0 0
      %620 = vmatmul.mubr.bf16.gmra.mxu0 %v451
      %v621 = vpop.f32.mrf.mxu0
      %v622 = vadd.f32 0.0, %v621
      %v623 = vpop.f32.mrf.mxu0
      %v624 = vpop.f32.mrf.mxu0
      %v625 = vadd.f32 0.0, %v624
      %v626 = vpop.f32.mrf.mxu0
      %627 = vmatprep.mubr.bf16.mxu0 0
      %628 = vmatmul.mubr.bf16.gmra.mxu0 %v452
      %v629 = vpop.f32.mrf.mxu0
      %v630 = vadd.f32 0.0, %v629
      %v631 = vpop.f32.mrf.mxu0
      %v632 = vpop.f32.mrf.mxu0
      %v633 = vadd.f32 0.0, %v632
      %v634 = vpop.f32.mrf.mxu0
      %635 = vmatprep.mubr.bf16.mxu0 0
      %636 = vmatmul.mubr.bf16.gmra.mxu0 %v453
      %v637 = vpop.f32.mrf.mxu0
      %v638 = vadd.f32 0.0, %v637
      %v639 = vpop.f32.mrf.mxu0
      %v640 = vpop.f32.mrf.mxu0
      %v641 = vadd.f32 0.0, %v640
      %v642 = vpop.f32.mrf.mxu0
      %643 = vmatprep.mubr.bf16.mxu0 0
      %644 = vmatmul.mubr.bf16.gmra.mxu0 %v454
      %v645 = vpop.f32.mrf.mxu0
      %v646 = vadd.f32 0.0, %v645
      %v647 = vpop.f32.mrf.mxu0
      %v648 = vpop.f32.mrf.mxu0
      %v649 = vadd.f32 0.0, %v648
      %v650 = vpop.f32.mrf.mxu0
      %651 = vmatprep.mubr.bf16.mxu0 0
      %652 = vmatmul.mubr.bf16.gmra.mxu0 %v455
      %v653 = vpop.f32.mrf.mxu0
      %v654 = vadd.f32 0.0, %v653
      %v655 = vpop.f32.mrf.mxu0
      %v656 = vpop.f32.mrf.mxu0
      %v657 = vadd.f32 0.0, %v656
      %v658 = vpop.f32.mrf.mxu0
      %659 = vmatprep.mubr.bf16.mxu0 0
      %660 = vmatmul.mubr.bf16.gmra.mxu0 %v456
      %v661 = vpop.f32.mrf.mxu0
      %v662 = vadd.f32 0.0, %v661
      %v663 = vpop.f32.mrf.mxu0
      %v664 = vpop.f32.mrf.mxu0
      %v665 = vadd.f32 0.0, %v664
      %v666 = vpop.f32.mrf.mxu0
      %667 = vmatprep.mubr.bf16.mxu0 0
      %668 = vmatmul.mubr.bf16.gmra.mxu0 %v457
      %v669 = vpop.f32.mrf.mxu0
      %v670 = vadd.f32 0.0, %v669
      %v671 = vpop.f32.mrf.mxu0
      %v672 = vpop.f32.mrf.mxu0
      %v673 = vadd.f32 0.0, %v672
      %v674 = vpop.f32.mrf.mxu0
      %675 = vmatprep.mubr.bf16.mxu0 0
      %676 = vmatmul.mubr.bf16.gmra.mxu0 %v458
      %v677 = vpop.f32.mrf.mxu0
      %v678 = vadd.f32 0.0, %v677
      %v679 = vpop.f32.mrf.mxu0
      %v680 = vpop.f32.mrf.mxu0
      %v681 = vadd.f32 0.0, %v680
      %v682 = vpop.f32.mrf.mxu0
      %683 = vdwg.mxu0
      %v684 = vadd.f32 %v299, %v558
      %v685 = vadd.f32 %v300, %v561
      %v686 = vadd.f32 %v301, %v566
      %v687 = vadd.f32 %v302, %v569
      %v688 = vadd.f32 %v303, %v574
      %v689 = vadd.f32 %v304, %v577
      %v690 = vadd.f32 %v305, %v582
      %v691 = vadd.f32 %v306, %v585
      %v692 = vadd.f32 %v307, %v590
      %v693 = vadd.f32 %v308, %v593
      %v694 = vadd.f32 %v309, %v598
      %v695 = vadd.f32 %v310, %v601
      %v696 = vadd.f32 %v311, %v606
      %v697 = vadd.f32 %v312, %v609
      %v698 = vadd.f32 %v313, %v614
      %v699 = vadd.f32 %v314, %v617
      %v700 = vadd.f32 %v315, %v622
      %v701 = vadd.f32 %v316, %v625
      %v702 = vadd.f32 %v317, %v630
      %v703 = vadd.f32 %v318, %v633
      %v704 = vadd.f32 %v319, %v638
      %v705 = vadd.f32 %v320, %v641
      %v706 = vadd.f32 %v321, %v646
      %v707 = vadd.f32 %v322, %v649
      %v708 = vadd.f32 %v323, %v654
      %v709 = vadd.f32 %v324, %v657
      %v710 = vadd.f32 %v325, %v662
      %v711 = vadd.f32 %v326, %v665
      %v712 = vadd.f32 %v327, %v670
      %v713 = vadd.f32 %v328, %v673
      %v714 = vadd.f32 %v329, %v678
      %v715 = vadd.f32 %v330, %v681
      %716 = vst [vmem:[#allocation2] sm:$0xff] %v684
      %717 = vst [vmem:[#allocation2 + $0x8] sm:$0xff] %v685
      %718 = vst [vmem:[#allocation2 + $0x10] sm:$0xff] %v686
      %719 = vst [vmem:[#allocation2 + $0x18] sm:$0xff] %v687
      %720 = vst [vmem:[#allocation2 + $0x20] sm:$0xff] %v688
      %721 = vst [vmem:[#allocation2 + $0x28] sm:$0xff] %v689
      %722 = vst [vmem:[#allocation2 + $0x30] sm:$0xff] %v690
      %723 = vst [vmem:[#allocation2 + $0x38] sm:$0xff] %v691
      %724 = vst [vmem:[#allocation2 + $0x40] sm:$0xff] %v692
      %725 = vst [vmem:[#allocation2 + $0x48] sm:$0xff] %v693
      %726 = vst [vmem:[#allocation2 + $0x50] sm:$0xff] %v694
      %727 = vst [vmem:[#allocation2 + $0x58] sm:$0xff] %v695
      %728 = vst [vmem:[#allocation2 + $0x60] sm:$0xff] %v696
      %729 = vst [vmem:[#allocation2 + $0x68] sm:$0xff] %v697
      %730 = vst [vmem:[#allocation2 + $0x70] sm:$0xff] %v698
      %731 = vst [vmem:[#allocation2 + $0x78] sm:$0xff] %v699
      %732 = vst [vmem:[#allocation2 + $0x80] sm:$0xff] %v700
      %733 = vst [vmem:[#allocation2 + $0x88] sm:$0xff] %v701
      %734 = vst [vmem:[#allocation2 + $0x90] sm:$0xff] %v702
      %735 = vst [vmem:[#allocation2 + $0x98] sm:$0xff] %v703
      %736 = vst [vmem:[#allocation2 + $0xa0] sm:$0xff] %v704
      %737 = vst [vmem:[#allocation2 + $0xa8] sm:$0xff] %v705
      %738 = vst [vmem:[#allocation2 + $0xb0] sm:$0xff] %v706
      %739 = vst [vmem:[#allocation2 + $0xb8] sm:$0xff] %v707
      %740 = vst [vmem:[#allocation2 + $0xc0] sm:$0xff] %v708
      %741 = vst [vmem:[#allocation2 + $0xc8] sm:$0xff] %v709
      %742 = vst [vmem:[#allocation2 + $0xd0] sm:$0xff] %v710
      %743 = vst [vmem:[#allocation2 + $0xd8] sm:$0xff] %v711
      %744 = vst [vmem:[#allocation2 + $0xe0] sm:$0xff] %v712
      %745 = vst [vmem:[#allocation2 + $0xe8] sm:$0xff] %v713
      %746 = vst [vmem:[#allocation2 + $0xf0] sm:$0xff] %v714
      %747 = vst [vmem:[#allocation2 + $0xf8] sm:$0xff] %v715
      // Predicated region
      $region37: #{conv_decoder_forward.2} parent=27 // pred_check
        %p748 = pneg %p258
      $region38: #{conv_decoder_forward.2} parent=27 // pred_check_branch
        %750 = sbr.rel (%p748) target = $region40
      $region39: #{conv_decoder_forward.2} parent=27 // pred_region
        %v751 = vld [vmem:[#allocation2] sm:$0xff]
        %v752 = vld [vmem:[#allocation2 + $0x8] sm:$0xff]
        %v753 = vld [vmem:[#allocation2 + $0x10] sm:$0xff]
        %v754 = vld [vmem:[#allocation2 + $0x18] sm:$0xff]
        %v755 = vld [vmem:[#allocation2 + $0x20] sm:$0xff]
        %v756 = vld [vmem:[#allocation2 + $0x28] sm:$0xff]
        %v757 = vld [vmem:[#allocation2 + $0x30] sm:$0xff]
        %v758 = vld [vmem:[#allocation2 + $0x38] sm:$0xff]
        %v759 = vld [vmem:[#allocation2 + $0x40] sm:$0xff]
        %v760 = vld [vmem:[#allocation2 + $0x48] sm:$0xff]
        %v761 = vld [vmem:[#allocation2 + $0x50] sm:$0xff]
        %v762 = vld [vmem:[#allocation2 + $0x58] sm:$0xff]
        %v763 = vld [vmem:[#allocation2 + $0x60] sm:$0xff]
        %v764 = vld [vmem:[#allocation2 + $0x68] sm:$0xff]
        %v765 = vld [vmem:[#allocation2 + $0x70] sm:$0xff]
        %v766 = vld [vmem:[#allocation2 + $0x78] sm:$0xff]
        %v767 = vld [vmem:[#allocation2 + $0x80] sm:$0xff]
        %v768 = vld [vmem:[#allocation2 + $0x88] sm:$0xff]
        %v769 = vld [vmem:[#allocation2 + $0x90] sm:$0xff]
        %v770 = vld [vmem:[#allocation2 + $0x98] sm:$0xff]
        %v771 = vld [vmem:[#allocation2 + $0xa0] sm:$0xff]
        %v772 = vld [vmem:[#allocation2 + $0xa8] sm:$0xff]
        %v773 = vld [vmem:[#allocation2 + $0xb0] sm:$0xff]
        %v774 = vld [vmem:[#allocation2 + $0xb8] sm:$0xff]
        %v775 = vld [vmem:[#allocation2 + $0xc0] sm:$0xff]
        %v776 = vld [vmem:[#allocation2 + $0xc8] sm:$0xff]
        %v777 = vld [vmem:[#allocation2 + $0xd0] sm:$0xff]
        %v778 = vld [vmem:[#allocation2 + $0xd8] sm:$0xff]
        %v779 = vld [vmem:[#allocation2 + $0xe0] sm:$0xff]
        %v780 = vld [vmem:[#allocation2 + $0xe8] sm:$0xff]
        %v781 = vld [vmem:[#allocation2 + $0xf0] sm:$0xff]
        %v782 = vld [vmem:[#allocation2 + $0xf8] sm:$0xff]
        %v783 = vpack.c.bf16 %v752, %v751
        %v784 = vpack.c.bf16 %v754, %v753
        %v785 = vpack.c.bf16 %v756, %v755
        %v786 = vpack.c.bf16 %v758, %v757
        %v787 = vpack.c.bf16 %v760, %v759
        %v788 = vpack.c.bf16 %v762, %v761
        %v789 = vpack.c.bf16 %v764, %v763
        %v790 = vpack.c.bf16 %v766, %v765
        %v791 = vpack.c.bf16 %v768, %v767
        %v792 = vpack.c.bf16 %v770, %v769
        %v793 = vpack.c.bf16 %v772, %v771
        %v794 = vpack.c.bf16 %v774, %v773
        %v795 = vpack.c.bf16 %v776, %v775
        %v796 = vpack.c.bf16 %v778, %v777
        %v797 = vpack.c.bf16 %v780, %v779
        %v798 = vpack.c.bf16 %v782, %v781
        %v815 = vunpack.c.l.b16 %v783
        %v816 = vunpack.c.h.b16 %v783
        %v817 = vunpack.c.l.b16 %v784
        %v818 = vunpack.c.h.b16 %v784
        %v819 = vunpack.c.l.b16 %v785
        %v820 = vunpack.c.h.b16 %v785
        %v821 = vunpack.c.l.b16 %v786
        %v822 = vunpack.c.h.b16 %v786
        %v823 = vunpack.c.l.b16 %v787
        %v824 = vunpack.c.h.b16 %v787
        %v825 = vunpack.c.l.b16 %v788
        %v826 = vunpack.c.h.b16 %v788
        %v827 = vunpack.c.l.b16 %v789
        %v828 = vunpack.c.h.b16 %v789
        %v829 = vunpack.c.l.b16 %v790
        %v830 = vunpack.c.h.b16 %v790
        %v831 = vunpack.c.l.b16 %v791
        %v832 = vunpack.c.h.b16 %v791
        %v833 = vunpack.c.l.b16 %v792
        %v834 = vunpack.c.h.b16 %v792
        %v835 = vunpack.c.l.b16 %v793
        %v836 = vunpack.c.h.b16 %v793
        %v837 = vunpack.c.l.b16 %v794
        %v838 = vunpack.c.h.b16 %v794
        %v839 = vunpack.c.l.b16 %v795
        %v840 = vunpack.c.h.b16 %v795
        %v841 = vunpack.c.l.b16 %v796
        %v842 = vunpack.c.h.b16 %v796
        %v843 = vunpack.c.l.b16 %v797
        %v844 = vunpack.c.h.b16 %v797
        %v845 = vunpack.c.l.b16 %v798
        %v846 = vunpack.c.h.b16 %v798
        %v847 = vpack.c.b16 %v815, %v815
        %v848 = vpack.c.b16 %v816, %v816
        %v849 = vpack.c.b16 %v817, %v817
        %v850 = vpack.c.b16 %v818, %v818
        %v851 = vpack.c.b16 %v819, %v819
        %v852 = vpack.c.b16 %v820, %v820
        %v853 = vpack.c.b16 %v821, %v821
        %v854 = vpack.c.b16 %v822, %v822
        %v855 = vpack.c.b16 %v823, %v823
        %v856 = vpack.c.b16 %v824, %v824
        %v857 = vpack.c.b16 %v825, %v825
        %v858 = vpack.c.b16 %v826, %v826
        %v859 = vpack.c.b16 %v827, %v827
        %v860 = vpack.c.b16 %v828, %v828
        %v861 = vpack.c.b16 %v829, %v829
        %v862 = vpack.c.b16 %v830, %v830
        %v863 = vpack.c.b16 %v831, %v831
        %v864 = vpack.c.b16 %v832, %v832
        %v865 = vpack.c.b16 %v833, %v833
        %v866 = vpack.c.b16 %v834, %v834
        %v867 = vpack.c.b16 %v835, %v835
        %v868 = vpack.c.b16 %v836, %v836
        %v869 = vpack.c.b16 %v837, %v837
        %v870 = vpack.c.b16 %v838, %v838
        %v871 = vpack.c.b16 %v839, %v839
        %v872 = vpack.c.b16 %v840, %v840
        %v873 = vpack.c.b16 %v841, %v841
        %v874 = vpack.c.b16 %v842, %v842
        %v875 = vpack.c.b16 %v843, %v843
        %v876 = vpack.c.b16 %v844, %v844
        %v877 = vpack.c.b16 %v845, %v845
        %v878 = vpack.c.b16 %v846, %v846
        %911 = vst [vmem:[%s250] sm:$0xf] %v847
        %912 = vst [vmem:[%s250 + $0x4] sm:$0xf] %v848
        %913 = vst [vmem:[%s250 + $0x8] sm:$0xf] %v849
        %914 = vst [vmem:[%s250 + $0xc] sm:$0xf] %v850
        %915 = vst [vmem:[%s250 + $0x10] sm:$0xf] %v851
        %916 = vst [vmem:[%s250 + $0x14] sm:$0xf] %v852
        %917 = vst [vmem:[%s250 + $0x18] sm:$0xf] %v853
        %918 = vst [vmem:[%s250 + $0x1c] sm:$0xf] %v854
        %919 = vst [vmem:[%s250 + $0x20] sm:$0xf] %v855
        %920 = vst [vmem:[%s250 + $0x24] sm:$0xf] %v856
        %921 = vst [vmem:[%s250 + $0x28] sm:$0xf] %v857
        %922 = vst [vmem:[%s250 + $0x2c] sm:$0xf] %v858
        %923 = vst [vmem:[%s250 + $0x30] sm:$0xf] %v859
        %924 = vst [vmem:[%s250 + $0x34] sm:$0xf] %v860
        %925 = vst [vmem:[%s250 + $0x38] sm:$0xf] %v861
        %926 = vst [vmem:[%s250 + $0x3c] sm:$0xf] %v862
        %927 = vst [vmem:[%s250 + $0x40] sm:$0xf] %v863
        %928 = vst [vmem:[%s250 + $0x44] sm:$0xf] %v864
        %929 = vst [vmem:[%s250 + $0x48] sm:$0xf] %v865
        %930 = vst [vmem:[%s250 + $0x4c] sm:$0xf] %v866
        %931 = vst [vmem:[%s250 + $0x50] sm:$0xf] %v867
        %932 = vst [vmem:[%s250 + $0x54] sm:$0xf] %v868
        %933 = vst [vmem:[%s250 + $0x58] sm:$0xf] %v869
        %934 = vst [vmem:[%s250 + $0x5c] sm:$0xf] %v870
        %935 = vst [vmem:[%s250 + $0x60] sm:$0xf] %v871
        %936 = vst [vmem:[%s250 + $0x64] sm:$0xf] %v872
        %937 = vst [vmem:[%s250 + $0x68] sm:$0xf] %v873
        %938 = vst [vmem:[%s250 + $0x6c] sm:$0xf] %v874
        %939 = vst [vmem:[%s250 + $0x70] sm:$0xf] %v875
        %940 = vst [vmem:[%s250 + $0x74] sm:$0xf] %v876
        %941 = vst [vmem:[%s250 + $0x78] sm:$0xf] %v877
        %942 = vst [vmem:[%s250 + $0x7c] sm:$0xf] %v878
        %v943 = vadd.f32 %v751, %v752
        %v944 = vadd.f32 %v943, %v753
        %v945 = vadd.f32 %v944, %v754
        %v946 = vadd.f32 %v945, %v755
        %v947 = vadd.f32 %v946, %v756
        %v948 = vadd.f32 %v947, %v757
        %v949 = vadd.f32 %v948, %v758
        %v950 = vadd.f32 %v949, %v759
        %v951 = vadd.f32 %v950, %v760
        %v952 = vadd.f32 %v951, %v761
        %v953 = vadd.f32 %v952, %v762
        %v954 = vadd.f32 %v953, %v763
        %v955 = vadd.f32 %v954, %v764
        %v956 = vadd.f32 %v955, %v765
        %v957 = vadd.f32 %v956, %v766
        %v958 = vadd.f32 %v957, %v767
        %v959 = vadd.f32 %v958, %v768
        %v960 = vadd.f32 %v959, %v769
        %v961 = vadd.f32 %v960, %v770
        %v962 = vadd.f32 %v961, %v771
        %v963 = vadd.f32 %v962, %v772
        %v964 = vadd.f32 %v963, %v773
        %v965 = vadd.f32 %v964, %v774
        %v966 = vadd.f32 %v965, %v775
        %v967 = vadd.f32 %v966, %v776
        %v968 = vadd.f32 %v967, %v777
        %v969 = vadd.f32 %v968, %v778
        %v970 = vadd.f32 %v969, %v779
        %v971 = vadd.f32 %v970, %v780
        %v972 = vadd.f32 %v971, %v781
        %v973 = vadd.f32 %v972, %v782
        %v974 = vrot.slane %v973, 4
        %v975 = vadd.f32 %v973, %v974
        %v976 = vrot.slane %v975, 2
        %v977 = vadd.f32 %v975, %v976
        %v978 = vrot.slane %v977, 1
        %v979 = vadd.f32 %v977, %v978
        %v980 = vmul.f32 %v751, %v751
        %v981 = vmul.f32 %v752, %v752
        %v982 = vmul.f32 %v753, %v753
        %v983 = vmul.f32 %v754, %v754
        %v984 = vmul.f32 %v755, %v755
        %v985 = vmul.f32 %v756, %v756
        %v986 = vmul.f32 %v757, %v757
        %v987 = vmul.f32 %v758, %v758
        %v988 = vmul.f32 %v759, %v759
        %v989 = vmul.f32 %v760, %v760
        %v990 = vmul.f32 %v761, %v761
        %v991 = vmul.f32 %v762, %v762
        %v992 = vmul.f32 %v763, %v763
        %v993 = vmul.f32 %v764, %v764
        %v994 = vmul.f32 %v765, %v765
        %v995 = vmul.f32 %v766, %v766
        %v996 = vmul.f32 %v767, %v767
        %v997 = vmul.f32 %v768, %v768
        %v998 = vmul.f32 %v769, %v769
        %v999 = vmul.f32 %v770, %v770
        %v1000 = vmul.f32 %v771, %v771
        %v1001 = vmul.f32 %v772, %v772
        %v1002 = vmul.f32 %v773, %v773
        %v1003 = vmul.f32 %v774, %v774
        %v1004 = vmul.f32 %v775, %v775
        %v1005 = vmul.f32 %v776, %v776
        %v1006 = vmul.f32 %v777, %v777
        %v1007 = vmul.f32 %v778, %v778
        %v1008 = vmul.f32 %v779, %v779
        %v1009 = vmul.f32 %v780, %v780
        %v1010 = vmul.f32 %v781, %v781
        %v1011 = vmul.f32 %v782, %v782
        %v1012 = vadd.f32 %v980, %v981
        %v1013 = vadd.f32 %v1012, %v982
        %v1014 = vadd.f32 %v1013, %v983
        %v1015 = vadd.f32 %v1014, %v984
        %v1016 = vadd.f32 %v1015, %v985
        %v1017 = vadd.f32 %v1016, %v986
        %v1018 = vadd.f32 %v1017, %v987
        %v1019 = vadd.f32 %v1018, %v988
        %v1020 = vadd.f32 %v1019, %v989
        %v1021 = vadd.f32 %v1020, %v990
        %v1022 = vadd.f32 %v1021, %v991
        %v1023 = vadd.f32 %v1022, %v992
        %v1024 = vadd.f32 %v1023, %v993
        %v1025 = vadd.f32 %v1024, %v994
        %v1026 = vadd.f32 %v1025, %v995
        %v1027 = vadd.f32 %v1026, %v996
        %v1028 = vadd.f32 %v1027, %v997
        %v1029 = vadd.f32 %v1028, %v998
        %v1030 = vadd.f32 %v1029, %v999
        %v1031 = vadd.f32 %v1030, %v1000
        %v1032 = vadd.f32 %v1031, %v1001
        %v1033 = vadd.f32 %v1032, %v1002
        %v1034 = vadd.f32 %v1033, %v1003
        %v1035 = vadd.f32 %v1034, %v1004
        %v1036 = vadd.f32 %v1035, %v1005
        %v1037 = vadd.f32 %v1036, %v1006
        %v1038 = vadd.f32 %v1037, %v1007
        %v1039 = vadd.f32 %v1038, %v1008
        %v1040 = vadd.f32 %v1039, %v1009
        %v1041 = vadd.f32 %v1040, %v1010
        %v1042 = vadd.f32 %v1041, %v1011
        %v1043 = vrot.slane %v1042, 4
        %v1044 = vadd.f32 %v1042, %v1043
        %v1045 = vrot.slane %v1044, 2
        %v1046 = vadd.f32 %v1044, %v1045
        %v1047 = vrot.slane %v1046, 1
        %v1048 = vadd.f32 %v1046, %v1047
        %v1049 = vld [vmem:[%s255] sm:$0x3]
        %vm1050 = vcmask 1040384
        %v1051 = vsel %vm1050, %v979, %v1048
        %v1052 = vadd.f32 %v1049, %v1051
        %1053 = vst [vmem:[%s255] sm:$0x3] %v1052
      $region40: #{conv_decoder_forward.2} parent=27 // pred_fallthru
        _
      %s1054 = smul.u32 32, %s21
      %p1055 = scmp.lt.s32.totalorder %s1054, 63
      %s1056 = scalar_select %p1055, %s1054, 63
      %p1057 = scmp.lt.s32.totalorder %s20, 0
      %s1058 = scalar_select %p1057, %s20, 0
      %s1059 = sadd.s32 %s1058, %s1056
      %s1060 = smul.addr %s1059, 4
      %s1061 = scalar_lea.vmem %s2, %s1060
      %p1062 = scmp.lt.s32.totalorder %s20, 0
      %s1063 = scalar_select %p1062, %s20, 0
      %s1064 = smul.addr %s1063, 2
      %s1065 = scalar_lea.vmem %s3, %s1064
      // Predicated region
      $region41: #{conv_decoder_forward.2} parent=27 // pred_check
        %p1066 = pneg %p110
      $region42: #{conv_decoder_forward.2} parent=27 // pred_check_branch
        %1068 = sbr.rel (%p1066) target = $region44
      $region43: #{conv_decoder_forward.2} parent=27 // pred_region
        %s1069 = smul.u32 32, %s21
      $region44: #{conv_decoder_forward.2} parent=27 // pred_fallthru
        _
      // Predicated region
      $region45: #{conv_decoder_forward.2} parent=27 // pred_check
        %p1070 = pneg %p136
      $region46: #{conv_decoder_forward.2} parent=27 // pred_check_branch
        %1072 = sbr.rel (%p1070) target = $region48
      $region47: #{conv_decoder_forward.2} parent=27 // pred_region
        _
      $region48: #{conv_decoder_forward.2} parent=27 // pred_fallthru
        _
      // Predicated region
      $region49: #{conv_decoder_forward.2} parent=27 // pred_check
        %p1073 = pneg %p136
      $region50: #{conv_decoder_forward.2} parent=27 // pred_check_branch
        %1075 = sbr.rel (%p1073) target = $region52
      $region51: #{conv_decoder_forward.2} parent=27 // pred_region
        %p1076 = scmp.lt.s32.totalorder %s20, 0
        %s1077 = scalar_select %p1076, %s20, 0
        %s1078 = smul.addr %s1077, 2
        %s1079 = scalar_lea.vmem %s3, %s1078
      $region52: #{conv_decoder_forward.2} parent=27 // pred_fallthru
        _
    $region28: #{conv_decoder_forward.2} parent=5 // pred_fallthru
      _
    %p1080 = scmp.le.s32.totalorder 2, %s10
    // Predicated region
    $region53: #{conv_decoder_forward.2} parent=5 // pred_check
      %p1081 = pneg %p1080
    $region54: #{conv_decoder_forward.2} parent=5 // pred_check_branch
      %1083 = sbr.rel (%p1081) target = $region56
    $region55: #{conv_decoder_forward.2} parent=5 // pred_region
      %s1084 = ssub.s32 %s10, 2
      // Predicated region
      $region57: #{conv_decoder_forward.2} parent=55 // pred_check
        %p1085 = pneg %p116
      $region58: #{conv_decoder_forward.2} parent=55 // pred_check_branch
        %1087 = sbr.rel (%p1085) target = $region60
      $region59: #{conv_decoder_forward.2} parent=55 // pred_region
        %s1088 = smul.u32 32, %s24
        %p1089 = scmp.lt.s32.totalorder %s1088, 63
        %s1090 = scalar_select %p1089, %s1088, 63
        %p1091 = scmp.lt.s32.totalorder %s23, 0
        %s1092 = scalar_select %p1091, %s23, 0
        %s1093 = sadd.s32 %s1092, %s1090
        %s1094 = smul.addr %s1093, 4
        %s1095 = scalar_lea.vmem %s2, %s1094
      $region60: #{conv_decoder_forward.2} parent=55 // pred_fallthru
        _
    $region56: #{conv_decoder_forward.2} parent=5 // pred_fallthru
      _
  $region6: #{conv_decoder_forward.2} parent=0 // loop_footer
    %s14 = sadd.s32 1, %s10
  $region7: #{conv_decoder_forward.2} parent=0 // loop_footer_branch
    %9 = sbr.rel target = $region3
  $region8: #{conv_decoder_forward.2} parent=0 // loop_exit
    _

</llo_original>
